<compile_context>
chip_gen: v5e
topology: v5e:2x2
jax: 0.10.0
libtpu: 0.0.40
codegen_flags: <defaults>
</compile_context>

<pallas_src>
import functools

import jax
import jax.numpy as jnp
from jax.experimental import pallas as pl
from jax.experimental.pallas import tpu as pltpu


def _torchnet1_fused_kernel(xp_ref, w1_ref, w2_ref, w3_ref, w4_ref,
                            mL_ref, mR_ref, sh_ref,
                            o_ref, buf_ref, *, H, W, C0, C1, C2):
    """One grid step == one image. Everything channel-major, HW on lanes.

    xp_ref : (C0, HW + 2*(W+1))   host-padded, flat, channel-major input
    w1_ref : (9*C1, C0)           layer-1 tap-stacked weights (BN scale folded)
    w2_ref : (C2, C1)             layer-2 1x1 weights (BN scale folded)
    w3_ref : (9*C1, C2)           layer-3 tap-stacked weights (BN scale folded)
    w4_ref : (C2, C1)             layer-4 1x1 weights (BN scale folded)
    mL_ref : (1, HW)              mask: 0 where x == 0   (for taps with ox=-1)
    mR_ref : (1, HW)              mask: 0 where x == W-1 (for taps with ox=+1)
    sh_ref : (2*C1+2*C2, 1)       packed per-channel shifts (bias+BN folded)
    o_ref  : (C2, HW)             lane-dense, channel-major output
    buf_ref: (C2, HW + 2*(W+1))   flat zero-padded layer-3 input scratch
    """
    HW = H * W
    PAD = W + 1
    f32 = jnp.float32

    mL = mL_ref[...]
    mR = mR_ref[...]

    def conv3x3(tap_view, w_ref, cout):
        # 9 accumulated (cout, cin) x (cin, HW) matmuls over lane-shifted views.
        acc = None
        for dy in range(3):
            for dx in range(3):
                oy, ox = dy - 1, dx - 1
                v = tap_view(oy * W + ox)                     # (cin, HW)
                if ox == -1:
                    v = v * mL
                elif ox == 1:
                    v = v * mR
                t = dy * 3 + dx
                wt = w_ref[t * cout:(t + 1) * cout, :]        # (cout, cin)
                d = jnp.dot(wt, v, preferred_element_type=f32)
                acc = d if acc is None else acc + d
        return acc                                            # (cout, HW)

    # ---- Layer 1: 3x3 conv (C0 -> C1) + BN + ReLU ----
    y1 = conv3x3(lambda off: xp_ref[:, PAD + off:PAD + off + HW], w1_ref, C1)
    y1 = jnp.maximum(y1 + sh_ref[0:C1, :], 0.0)               # (C1, HW)

    # ---- Layer 2: 1x1 conv (C1 -> C2) + BN + ReLU ----
    y2 = jnp.dot(w2_ref[...], y1, preferred_element_type=f32)
    y2 = jnp.maximum(y2 + sh_ref[C1:C1 + C2, :], 0.0)         # (C2, HW)

    # ---- Layer 3: 3x3 conv (C2 -> C1) + BN + ReLU ----
    # Zero only the two border strips (megacore-safe), then store the
    # lane-dense activation into the interior.
    buf_ref[:, 0:PAD] = jnp.zeros((C2, PAD), f32)
    buf_ref[:, PAD + HW:PAD + HW + PAD] = jnp.zeros((C2, PAD), f32)
    buf_ref[:, PAD:PAD + HW] = y2
    y3 = conv3x3(lambda off: buf_ref[:, PAD + off:PAD + off + HW], w3_ref, C1)
    y3 = jnp.maximum(y3 + sh_ref[C1 + C2:2 * C1 + C2, :], 0.0)  # (C1, HW)

    # ---- Layer 4: 1x1 conv (C1 -> C2) + BN (no ReLU) ----
    y4 = jnp.dot(w4_ref[...], y3, preferred_element_type=f32)  # (C2, HW)
    o_ref[...] = y4 + sh_ref[2 * C1 + C2:2 * (C1 + C2), :]


def torchnet1_forward(x_nchw, params):
    """Full TorchNet1 forward. Input/output in NCHW, matching the PyTorch module."""
    N, C0, H, W = x_nchw.shape
    p1, p2, p3, p4 = params
    C1 = p1["w"].shape[-1]   # mod_dim1
    C2 = p2["w"].shape[-1]   # mod_dim2
    HW = H * W
    PAD = W + 1
    BW = HW + 2 * PAD        # flat, zero-padded activation width

    # Channel-major flat input (free reshape from NCHW) + host-side flat zero pad.
    x_flat = x_nchw.reshape(N, C0, HW).astype(jnp.float32)
    xp = jnp.pad(x_flat, ((0, 0), (0, 0), (PAD, PAD)))

    # Fold BN scale into the conv weights (per output channel) and the conv
    # bias into the BN shift:  (conv + b)*s + t == conv_scaled + (b*s + t)
    s1, s2, s3, s4 = (p["scale"] for p in params)
    w1r = (jnp.transpose(p1["w"], (0, 1, 3, 2)) * s1[None, None, :, None]
           ).reshape(9 * C1, C0)                                   # (9*C1, C0)
    w2r = jnp.transpose(p2["w"].reshape(C1, C2)) * s2[:, None]     # (C2, C1)
    w3r = (jnp.transpose(p3["w"], (0, 1, 3, 2)) * s3[None, None, :, None]
           ).reshape(9 * C1, C2)                                   # (9*C1, C2)
    w4r = jnp.transpose(p4["w"].reshape(C1, C2)) * s4[:, None]     # (C2, C1)

    shifts = jnp.concatenate(
        [p["b"] * p["scale"] + p["shift"] for p in params]).reshape(-1, 1)

    # Column-edge masks (for the 6 taps with ox != 0).
    col = jnp.arange(HW, dtype=jnp.int32) % W
    mL = (col != 0).astype(jnp.float32).reshape(1, HW)
    mR = (col != W - 1).astype(jnp.float32).reshape(1, HW)

    kernel = functools.partial(_torchnet1_fused_kernel,
                               H=H, W=W, C0=C0, C1=C1, C2=C2)

    def whole(arr):
        return pl.BlockSpec(arr.shape, lambda n: (0,) * arr.ndim)

    out = pl.pallas_call(
        kernel,
        out_shape=jax.ShapeDtypeStruct((N, C2, HW), jnp.float32),
        grid=(N,),
        in_specs=[
            pl.BlockSpec((None, C0, BW), lambda n: (n, 0, 0)),  # padded input
            whole(w1r), whole(w2r), whole(w3r), whole(w4r),     # folded weights
            whole(mL), whole(mR),                               # edge masks
            whole(shifts),                                      # packed shifts
        ],
        out_specs=pl.BlockSpec((None, C2, HW), lambda n: (n, 0, 0)),
        scratch_shapes=[
            pltpu.VMEM((C2, BW), jnp.float32),   # flat padded layer-3 input
        ],
        compiler_params=pltpu.CompilerParams(
            dimension_semantics=("parallel",)),
    )(xp, w1r, w2r, w3r, w4r, mL, mR, shifts)

    # (N, C2, H*W) is already channel-major: reshape straight to NCHW.
    return out.reshape(N, C2, H, W)


def init_layer(key, cin, cout, k):
    """Deterministic synthetic init matching nn.Conv2d / nn.BatchNorm2d shapes
    (BatchNorm in inference mode, folded to a per-channel affine)."""
    kw, kb, kg, kbt, km, kv = jax.random.split(key, 6)
    fan_in = cin * k * k
    bound = 1.0 / jnp.sqrt(fan_in)
    w = jax.random.uniform(kw, (k, k, cin, cout), jnp.float32, -bound, bound)  # HWIO
    b = jax.random.uniform(kb, (cout,), jnp.float32, -bound, bound)
    gamma = 1.0 + 0.1 * jax.random.normal(kg, (cout,), jnp.float32)
    beta = 0.1 * jax.random.normal(kbt, (cout,), jnp.float32)
    run_mean = 0.1 * jax.random.normal(km, (cout,), jnp.float32)
    run_var = 1.0 + 0.1 * jax.random.uniform(kv, (cout,), jnp.float32)
    eps = 1e-5
    scale = gamma / jnp.sqrt(run_var + eps)
    shift = beta - run_mean * scale
    return dict(w=w, b=b, scale=scale, shift=shift)


def torchnet1_reference(x_nchw, params):
    """Pure-JAX reference (lax conv) for correctness check."""
    x = jnp.transpose(x_nchw, (0, 2, 3, 1))
    relus = (True, True, True, False)
    for p, relu in zip(params, relus):
        k = p["w"].shape[0]
        pad = k // 2
        dn = jax.lax.conv_dimension_numbers(x.shape, p["w"].shape,
                                            ("NHWC", "HWIO", "NHWC"))
        y = jax.lax.conv_general_dilated(
            x, p["w"], window_strides=(1, 1),
            padding=((pad, pad), (pad, pad)), dimension_numbers=dn)
        y = y + p["b"]
        y = y * p["scale"] + p["shift"]
        if relu:
            y = jnp.maximum(y, 0.0)
        x = y
    return jnp.transpose(x, (0, 3, 1, 2))


if __name__ == "__main__":
    # TorchNet1(inp_dim=4, mod_dim1=16, mod_dim2=32), x: (2, 4, 16, 16) NCHW
    inp_dim, mod_dim1, mod_dim2 = 4, 16, 32
    N, H, W = 2, 16, 16

    root = jax.random.PRNGKey(0)
    kx, k1, k2, k3, k4 = jax.random.split(root, 5)

    x = jax.random.normal(kx, (N, inp_dim, H, W), jnp.float32)

    params = [
        init_layer(k1, inp_dim, mod_dim1, 3),   # Conv3x3  4->16, BN, ReLU
        init_layer(k2, mod_dim1, mod_dim2, 1),  # Conv1x1 16->32, BN, ReLU
        init_layer(k3, mod_dim2, mod_dim1, 3),  # Conv3x3 32->16, BN, ReLU
        init_layer(k4, mod_dim1, mod_dim2, 1),  # Conv1x1 16->32, BN
    ]

    out = torchnet1_forward(x, params)
    out = jax.block_until_ready(out)

    ref = torchnet1_reference(x, params)
    assert out.shape == (N, mod_dim2, H, W), out.shape
    assert jnp.allclose(out, ref, atol=2e-4, rtol=2e-4), \
        float(jnp.max(jnp.abs(out - ref)))

    print("KERNEL_OK")
</pallas_src>

<mosaic_0001>
module attributes {stable_mosaic.version = 11 : i64} {
  func.func @_torchnet1_fused_kernel(%arg0: i32, %arg1: memref<1x4x290xf32, #tpu.memory_space<vmem>>, %arg2: memref<144x4xf32, #tpu.memory_space<vmem>>, %arg3: memref<32x16xf32, #tpu.memory_space<vmem>>, %arg4: memref<144x32xf32, #tpu.memory_space<vmem>>, %arg5: memref<32x16xf32, #tpu.memory_space<vmem>>, %arg6: memref<1x256xf32, #tpu.memory_space<vmem>>, %arg7: memref<1x256xf32, #tpu.memory_space<vmem>>, %arg8: memref<96x1xf32, #tpu.memory_space<vmem>>, %arg9: memref<1x32x256xf32, #tpu.memory_space<vmem>>, %arg10: memref<32x290xf32, #tpu.memory_space<vmem>>) attributes {dimension_semantics = [#tpu.dimension_semantics<parallel>], iteration_bounds = array<i64: 2>, scalar_prefetch = 0 : i64, scratch_operands = 1 : i64, tpu.core_type = #tpu.core_type<tc>, window_params = [{transform_indices = @transform_0, window_bounds = array<i64: 1, 4, 290>}, {pipeline_mode = #tpu.pipeline_mode<synchronous>, transform_indices = @transform_1, window_bounds = array<i64: 144, 4>}, {pipeline_mode = #tpu.pipeline_mode<synchronous>, transform_indices = @transform_2, window_bounds = array<i64: 32, 16>}, {pipeline_mode = #tpu.pipeline_mode<synchronous>, transform_indices = @transform_3, window_bounds = array<i64: 144, 32>}, {pipeline_mode = #tpu.pipeline_mode<synchronous>, transform_indices = @transform_4, window_bounds = array<i64: 32, 16>}, {pipeline_mode = #tpu.pipeline_mode<synchronous>, transform_indices = @transform_5, window_bounds = array<i64: 1, 256>}, {pipeline_mode = #tpu.pipeline_mode<synchronous>, transform_indices = @transform_6, window_bounds = array<i64: 1, 256>}, {pipeline_mode = #tpu.pipeline_mode<synchronous>, transform_indices = @transform_7, window_bounds = array<i64: 96, 1>}, {transform_indices = @transform_8, window_bounds = array<i64: 1, 32, 256>}]} {
    %c0 = arith.constant 0 : index
    %c0_0 = arith.constant 0 : index
    %0 = vector.load %arg6[%c0, %c0_0] : memref<1x256xf32, #tpu.memory_space<vmem>>, vector<1x256xf32>
    %c0_1 = arith.constant 0 : index
    %c0_2 = arith.constant 0 : index
    %1 = vector.load %arg7[%c0_1, %c0_2] : memref<1x256xf32, #tpu.memory_space<vmem>>, vector<1x256xf32>
    %c0_3 = arith.constant 0 : index
    %c0_4 = arith.constant 0 : index
    %c0_5 = arith.constant 0 : index
    %2 = vector.load %arg1[%c0_3, %c0_4, %c0_5] : memref<1x4x290xf32, #tpu.memory_space<vmem>>, vector<1x4x256xf32>
    %3 = vector.shape_cast %2 : vector<1x4x256xf32> to vector<4x256xf32>
    %4 = vector.broadcast %0 : vector<1x256xf32> to vector<4x256xf32>
    %5 = arith.mulf %3, %4 : vector<4x256xf32>
    %c0_6 = arith.constant 0 : index
    %c0_7 = arith.constant 0 : index
    %6 = vector.load %arg2[%c0_6, %c0_7] : memref<144x4xf32, #tpu.memory_space<vmem>>, vector<16x4xf32>
    %cst = arith.constant dense<0.000000e+00> : vector<16x256xf32>
    %7 = tpu.matmul %6, %5, %cst {dimension_numbers = #tpu.dot_dimension_numbers<[1], [0], [0], [1], [0, 0, 1, 1], [], []>} : vector<16x4xf32>, vector<4x256xf32>, vector<16x256xf32> -> vector<16x256xf32>
    %c0_8 = arith.constant 0 : index
    %c0_9 = arith.constant 0 : index
    %c1 = arith.constant 1 : index
    %8 = vector.load %arg1[%c0_8, %c0_9, %c1] : memref<1x4x290xf32, #tpu.memory_space<vmem>>, vector<1x4x256xf32>
    %9 = vector.shape_cast %8 : vector<1x4x256xf32> to vector<4x256xf32>
    %c16 = arith.constant 16 : index
    %c0_10 = arith.constant 0 : index
    %10 = vector.load %arg2[%c16, %c0_10] : memref<144x4xf32, #tpu.memory_space<vmem>>, vector<16x4xf32>
    %cst_11 = arith.constant dense<0.000000e+00> : vector<16x256xf32>
    %11 = tpu.matmul %10, %9, %cst_11 {dimension_numbers = #tpu.dot_dimension_numbers<[1], [0], [0], [1], [0, 0, 1, 1], [], []>} : vector<16x4xf32>, vector<4x256xf32>, vector<16x256xf32> -> vector<16x256xf32>
    %12 = arith.addf %7, %11 : vector<16x256xf32>
    %c0_12 = arith.constant 0 : index
    %c0_13 = arith.constant 0 : index
    %c2 = arith.constant 2 : index
    %13 = vector.load %arg1[%c0_12, %c0_13, %c2] : memref<1x4x290xf32, #tpu.memory_space<vmem>>, vector<1x4x256xf32>
    %14 = vector.shape_cast %13 : vector<1x4x256xf32> to vector<4x256xf32>
    %15 = vector.broadcast %1 : vector<1x256xf32> to vector<4x256xf32>
    %16 = arith.mulf %14, %15 : vector<4x256xf32>
    %c32 = arith.constant 32 : index
    %c0_14 = arith.constant 0 : index
    %17 = vector.load %arg2[%c32, %c0_14] : memref<144x4xf32, #tpu.memory_space<vmem>>, vector<16x4xf32>
    %cst_15 = arith.constant dense<0.000000e+00> : vector<16x256xf32>
    %18 = tpu.matmul %17, %16, %cst_15 {dimension_numbers = #tpu.dot_dimension_numbers<[1], [0], [0], [1], [0, 0, 1, 1], [], []>} : vector<16x4xf32>, vector<4x256xf32>, vector<16x256xf32> -> vector<16x256xf32>
    %19 = arith.addf %12, %18 : vector<16x256xf32>
    %c0_16 = arith.constant 0 : index
    %c0_17 = arith.constant 0 : index
    %c16_18 = arith.constant 16 : index
    %20 = vector.load %arg1[%c0_16, %c0_17, %c16_18] : memref<1x4x290xf32, #tpu.memory_space<vmem>>, vector<1x4x256xf32>
    %21 = vector.shape_cast %20 : vector<1x4x256xf32> to vector<4x256xf32>
    %22 = vector.broadcast %0 : vector<1x256xf32> to vector<4x256xf32>
    %23 = arith.mulf %21, %22 : vector<4x256xf32>
    %c48 = arith.constant 48 : index
    %c0_19 = arith.constant 0 : index
    %24 = vector.load %arg2[%c48, %c0_19] : memref<144x4xf32, #tpu.memory_space<vmem>>, vector<16x4xf32>
    %cst_20 = arith.constant dense<0.000000e+00> : vector<16x256xf32>
    %25 = tpu.matmul %24, %23, %cst_20 {dimension_numbers = #tpu.dot_dimension_numbers<[1], [0], [0], [1], [0, 0, 1, 1], [], []>} : vector<16x4xf32>, vector<4x256xf32>, vector<16x256xf32> -> vector<16x256xf32>
    %26 = arith.addf %19, %25 : vector<16x256xf32>
    %c0_21 = arith.constant 0 : index
    %c0_22 = arith.constant 0 : index
    %c17 = arith.constant 17 : index
    %27 = vector.load %arg1[%c0_21, %c0_22, %c17] : memref<1x4x290xf32, #tpu.memory_space<vmem>>, vector<1x4x256xf32>
    %28 = vector.shape_cast %27 : vector<1x4x256xf32> to vector<4x256xf32>
    %c64 = arith.constant 64 : index
    %c0_23 = arith.constant 0 : index
    %29 = vector.load %arg2[%c64, %c0_23] : memref<144x4xf32, #tpu.memory_space<vmem>>, vector<16x4xf32>
    %cst_24 = arith.constant dense<0.000000e+00> : vector<16x256xf32>
    %30 = tpu.matmul %29, %28, %cst_24 {dimension_numbers = #tpu.dot_dimension_numbers<[1], [0], [0], [1], [0, 0, 1, 1], [], []>} : vector<16x4xf32>, vector<4x256xf32>, vector<16x256xf32> -> vector<16x256xf32>
    %31 = arith.addf %26, %30 : vector<16x256xf32>
    %c0_25 = arith.constant 0 : index
    %c0_26 = arith.constant 0 : index
    %c18 = arith.constant 18 : index
    %32 = vector.load %arg1[%c0_25, %c0_26, %c18] : memref<1x4x290xf32, #tpu.memory_space<vmem>>, vector<1x4x256xf32>
    %33 = vector.shape_cast %32 : vector<1x4x256xf32> to vector<4x256xf32>
    %34 = vector.broadcast %1 : vector<1x256xf32> to vector<4x256xf32>
    %35 = arith.mulf %33, %34 : vector<4x256xf32>
    %c80 = arith.constant 80 : index
    %c0_27 = arith.constant 0 : index
    %36 = vector.load %arg2[%c80, %c0_27] : memref<144x4xf32, #tpu.memory_space<vmem>>, vector<16x4xf32>
    %cst_28 = arith.constant dense<0.000000e+00> : vector<16x256xf32>
    %37 = tpu.matmul %36, %35, %cst_28 {dimension_numbers = #tpu.dot_dimension_numbers<[1], [0], [0], [1], [0, 0, 1, 1], [], []>} : vector<16x4xf32>, vector<4x256xf32>, vector<16x256xf32> -> vector<16x256xf32>
    %38 = arith.addf %31, %37 : vector<16x256xf32>
    %c0_29 = arith.constant 0 : index
    %c0_30 = arith.constant 0 : index
    %c32_31 = arith.constant 32 : index
    %39 = vector.load %arg1[%c0_29, %c0_30, %c32_31] : memref<1x4x290xf32, #tpu.memory_space<vmem>>, vector<1x4x256xf32>
    %40 = vector.shape_cast %39 : vector<1x4x256xf32> to vector<4x256xf32>
    %41 = vector.broadcast %0 : vector<1x256xf32> to vector<4x256xf32>
    %42 = arith.mulf %40, %41 : vector<4x256xf32>
    %c96 = arith.constant 96 : index
    %c0_32 = arith.constant 0 : index
    %43 = vector.load %arg2[%c96, %c0_32] : memref<144x4xf32, #tpu.memory_space<vmem>>, vector<16x4xf32>
    %cst_33 = arith.constant dense<0.000000e+00> : vector<16x256xf32>
    %44 = tpu.matmul %43, %42, %cst_33 {dimension_numbers = #tpu.dot_dimension_numbers<[1], [0], [0], [1], [0, 0, 1, 1], [], []>} : vector<16x4xf32>, vector<4x256xf32>, vector<16x256xf32> -> vector<16x256xf32>
    %45 = arith.addf %38, %44 : vector<16x256xf32>
    %c0_34 = arith.constant 0 : index
    %c0_35 = arith.constant 0 : index
    %c33 = arith.constant 33 : index
    %46 = vector.load %arg1[%c0_34, %c0_35, %c33] : memref<1x4x290xf32, #tpu.memory_space<vmem>>, vector<1x4x256xf32>
    %47 = vector.shape_cast %46 : vector<1x4x256xf32> to vector<4x256xf32>
    %c112 = arith.constant 112 : index
    %c0_36 = arith.constant 0 : index
    %48 = vector.load %arg2[%c112, %c0_36] : memref<144x4xf32, #tpu.memory_space<vmem>>, vector<16x4xf32>
    %cst_37 = arith.constant dense<0.000000e+00> : vector<16x256xf32>
    %49 = tpu.matmul %48, %47, %cst_37 {dimension_numbers = #tpu.dot_dimension_numbers<[1], [0], [0], [1], [0, 0, 1, 1], [], []>} : vector<16x4xf32>, vector<4x256xf32>, vector<16x256xf32> -> vector<16x256xf32>
    %50 = arith.addf %45, %49 : vector<16x256xf32>
    %c0_38 = arith.constant 0 : index
    %c0_39 = arith.constant 0 : index
    %c34 = arith.constant 34 : index
    %51 = vector.load %arg1[%c0_38, %c0_39, %c34] : memref<1x4x290xf32, #tpu.memory_space<vmem>>, vector<1x4x256xf32>
    %52 = vector.shape_cast %51 : vector<1x4x256xf32> to vector<4x256xf32>
    %53 = vector.broadcast %1 : vector<1x256xf32> to vector<4x256xf32>
    %54 = arith.mulf %52, %53 : vector<4x256xf32>
    %c128 = arith.constant 128 : index
    %c0_40 = arith.constant 0 : index
    %55 = vector.load %arg2[%c128, %c0_40] : memref<144x4xf32, #tpu.memory_space<vmem>>, vector<16x4xf32>
    %cst_41 = arith.constant dense<0.000000e+00> : vector<16x256xf32>
    %56 = tpu.matmul %55, %54, %cst_41 {dimension_numbers = #tpu.dot_dimension_numbers<[1], [0], [0], [1], [0, 0, 1, 1], [], []>} : vector<16x4xf32>, vector<4x256xf32>, vector<16x256xf32> -> vector<16x256xf32>
    %57 = arith.addf %50, %56 : vector<16x256xf32>
    %c0_42 = arith.constant 0 : index
    %c0_43 = arith.constant 0 : index
    %58 = vector.load %arg8[%c0_42, %c0_43] : memref<96x1xf32, #tpu.memory_space<vmem>>, vector<16x1xf32>
    %59 = vector.broadcast %58 : vector<16x1xf32> to vector<16x256xf32>
    %60 = arith.addf %57, %59 : vector<16x256xf32>
    %cst_44 = arith.constant 0.000000e+00 : f32
    %61 = vector.broadcast %cst_44 : f32 to vector<16x256xf32>
    %62 = arith.maximumf %60, %61 : vector<16x256xf32>
    %c0_45 = arith.constant 0 : index
    %c0_46 = arith.constant 0 : index
    %63 = vector.load %arg3[%c0_45, %c0_46] : memref<32x16xf32, #tpu.memory_space<vmem>>, vector<32x16xf32>
    %cst_47 = arith.constant dense<0.000000e+00> : vector<32x256xf32>
    %64 = tpu.matmul %63, %62, %cst_47 {dimension_numbers = #tpu.dot_dimension_numbers<[1], [0], [0], [1], [0, 0, 1, 1], [], []>} : vector<32x16xf32>, vector<16x256xf32>, vector<32x256xf32> -> vector<32x256xf32>
    %c16_48 = arith.constant 16 : index
    %c0_49 = arith.constant 0 : index
    %65 = vector.load %arg8[%c16_48, %c0_49] : memref<96x1xf32, #tpu.memory_space<vmem>>, vector<32x1xf32>
    %66 = vector.broadcast %65 : vector<32x1xf32> to vector<32x256xf32>
    %67 = arith.addf %64, %66 : vector<32x256xf32>
    %cst_50 = arith.constant 0.000000e+00 : f32
    %68 = vector.broadcast %cst_50 : f32 to vector<32x256xf32>
    %69 = arith.maximumf %67, %68 : vector<32x256xf32>
    %cst_51 = arith.constant 0.000000e+00 : f32
    %70 = vector.broadcast %cst_51 : f32 to vector<32x17xf32>
    %c0_52 = arith.constant 0 : index
    %c0_53 = arith.constant 0 : index
    %71 = vector.load %arg10[%c0_52, %c0_53] : memref<32x290xf32, #tpu.memory_space<vmem>>, vector<32x17xf32>
    tpu.vector_store %arg10[%c0_52, %c0_53], %70 {strides = array<i32>} : memref<32x290xf32, #tpu.memory_space<vmem>>, vector<32x17xf32>,
    %cst_54 = arith.constant 0.000000e+00 : f32
    %72 = vector.broadcast %cst_54 : f32 to vector<32x17xf32>
    %c0_55 = arith.constant 0 : index
    %c273 = arith.constant 273 : index
    %73 = vector.load %arg10[%c0_55, %c273] : memref<32x290xf32, #tpu.memory_space<vmem>>, vector<32x17xf32>
    tpu.vector_store %arg10[%c0_55, %c273], %72 {strides = array<i32>} : memref<32x290xf32, #tpu.memory_space<vmem>>, vector<32x17xf32>,
    %c0_56 = arith.constant 0 : index
    %c17_57 = arith.constant 17 : index
    %74 = vector.load %arg10[%c0_56, %c17_57] : memref<32x290xf32, #tpu.memory_space<vmem>>, vector<32x256xf32>
    tpu.vector_store %arg10[%c0_56, %c17_57], %69 {strides = array<i32>} : memref<32x290xf32, #tpu.memory_space<vmem>>, vector<32x256xf32>,
    %c0_58 = arith.constant 0 : index
    %c0_59 = arith.constant 0 : index
    %75 = vector.load %arg10[%c0_58, %c0_59] : memref<32x290xf32, #tpu.memory_space<vmem>>, vector<32x256xf32>
    %76 = vector.broadcast %0 : vector<1x256xf32> to vector<32x256xf32>
    %77 = arith.mulf %75, %76 : vector<32x256xf32>
    %c0_60 = arith.constant 0 : index
    %c0_61 = arith.constant 0 : index
    %78 = vector.load %arg4[%c0_60, %c0_61] : memref<144x32xf32, #tpu.memory_space<vmem>>, vector<16x32xf32>
    %cst_62 = arith.constant dense<0.000000e+00> : vector<16x256xf32>
    %79 = tpu.matmul %78, %77, %cst_62 {dimension_numbers = #tpu.dot_dimension_numbers<[1], [0], [0], [1], [0, 0, 1, 1], [], []>} : vector<16x32xf32>, vector<32x256xf32>, vector<16x256xf32> -> vector<16x256xf32>
    %c0_63 = arith.constant 0 : index
    %c1_64 = arith.constant 1 : index
    %80 = vector.load %arg10[%c0_63, %c1_64] : memref<32x290xf32, #tpu.memory_space<vmem>>, vector<32x256xf32>
    %c16_65 = arith.constant 16 : index
    %c0_66 = arith.constant 0 : index
    %81 = vector.load %arg4[%c16_65, %c0_66] : memref<144x32xf32, #tpu.memory_space<vmem>>, vector<16x32xf32>
    %cst_67 = arith.constant dense<0.000000e+00> : vector<16x256xf32>
    %82 = tpu.matmul %81, %80, %cst_67 {dimension_numbers = #tpu.dot_dimension_numbers<[1], [0], [0], [1], [0, 0, 1, 1], [], []>} : vector<16x32xf32>, vector<32x256xf32>, vector<16x256xf32> -> vector<16x256xf32>
    %83 = arith.addf %79, %82 : vector<16x256xf32>
    %c0_68 = arith.constant 0 : index
    %c2_69 = arith.constant 2 : index
    %84 = vector.load %arg10[%c0_68, %c2_69] : memref<32x290xf32, #tpu.memory_space<vmem>>, vector<32x256xf32>
    %85 = vector.broadcast %1 : vector<1x256xf32> to vector<32x256xf32>
    %86 = arith.mulf %84, %85 : vector<32x256xf32>
    %c32_70 = arith.constant 32 : index
    %c0_71 = arith.constant 0 : index
    %87 = vector.load %arg4[%c32_70, %c0_71] : memref<144x32xf32, #tpu.memory_space<vmem>>, vector<16x32xf32>
    %cst_72 = arith.constant dense<0.000000e+00> : vector<16x256xf32>
    %88 = tpu.matmul %87, %86, %cst_72 {dimension_numbers = #tpu.dot_dimension_numbers<[1], [0], [0], [1], [0, 0, 1, 1], [], []>} : vector<16x32xf32>, vector<32x256xf32>, vector<16x256xf32> -> vector<16x256xf32>
    %89 = arith.addf %83, %88 : vector<16x256xf32>
    %c0_73 = arith.constant 0 : index
    %c16_74 = arith.constant 16 : index
    %90 = vector.load %arg10[%c0_73, %c16_74] : memref<32x290xf32, #tpu.memory_space<vmem>>, vector<32x256xf32>
    %91 = vector.broadcast %0 : vector<1x256xf32> to vector<32x256xf32>
    %92 = arith.mulf %90, %91 : vector<32x256xf32>
    %c48_75 = arith.constant 48 : index
    %c0_76 = arith.constant 0 : index
    %93 = vector.load %arg4[%c48_75, %c0_76] : memref<144x32xf32, #tpu.memory_space<vmem>>, vector<16x32xf32>
    %cst_77 = arith.constant dense<0.000000e+00> : vector<16x256xf32>
    %94 = tpu.matmul %93, %92, %cst_77 {dimension_numbers = #tpu.dot_dimension_numbers<[1], [0], [0], [1], [0, 0, 1, 1], [], []>} : vector<16x32xf32>, vector<32x256xf32>, vector<16x256xf32> -> vector<16x256xf32>
    %95 = arith.addf %89, %94 : vector<16x256xf32>
    %c0_78 = arith.constant 0 : index
    %c17_79 = arith.constant 17 : index
    %96 = vector.load %arg10[%c0_78, %c17_79] : memref<32x290xf32, #tpu.memory_space<vmem>>, vector<32x256xf32>
    %c64_80 = arith.constant 64 : index
    %c0_81 = arith.constant 0 : index
    %97 = vector.load %arg4[%c64_80, %c0_81] : memref<144x32xf32, #tpu.memory_space<vmem>>, vector<16x32xf32>
    %cst_82 = arith.constant dense<0.000000e+00> : vector<16x256xf32>
    %98 = tpu.matmul %97, %96, %cst_82 {dimension_numbers = #tpu.dot_dimension_numbers<[1], [0], [0], [1], [0, 0, 1, 1], [], []>} : vector<16x32xf32>, vector<32x256xf32>, vector<16x256xf32> -> vector<16x256xf32>
    %99 = arith.addf %95, %98 : vector<16x256xf32>
    %c0_83 = arith.constant 0 : index
    %c18_84 = arith.constant 18 : index
    %100 = vector.load %arg10[%c0_83, %c18_84] : memref<32x290xf32, #tpu.memory_space<vmem>>, vector<32x256xf32>
    %101 = vector.broadcast %1 : vector<1x256xf32> to vector<32x256xf32>
    %102 = arith.mulf %100, %101 : vector<32x256xf32>
    %c80_85 = arith.constant 80 : index
    %c0_86 = arith.constant 0 : index
    %103 = vector.load %arg4[%c80_85, %c0_86] : memref<144x32xf32, #tpu.memory_space<vmem>>, vector<16x32xf32>
    %cst_87 = arith.constant dense<0.000000e+00> : vector<16x256xf32>
    %104 = tpu.matmul %103, %102, %cst_87 {dimension_numbers = #tpu.dot_dimension_numbers<[1], [0], [0], [1], [0, 0, 1, 1], [], []>} : vector<16x32xf32>, vector<32x256xf32>, vector<16x256xf32> -> vector<16x256xf32>
    %105 = arith.addf %99, %104 : vector<16x256xf32>
    %c0_88 = arith.constant 0 : index
    %c32_89 = arith.constant 32 : index
    %106 = vector.load %arg10[%c0_88, %c32_89] : memref<32x290xf32, #tpu.memory_space<vmem>>, vector<32x256xf32>
    %107 = vector.broadcast %0 : vector<1x256xf32> to vector<32x256xf32>
    %108 = arith.mulf %106, %107 : vector<32x256xf32>
    %c96_90 = arith.constant 96 : index
    %c0_91 = arith.constant 0 : index
    %109 = vector.load %arg4[%c96_90, %c0_91] : memref<144x32xf32, #tpu.memory_space<vmem>>, vector<16x32xf32>
    %cst_92 = arith.constant dense<0.000000e+00> : vector<16x256xf32>
    %110 = tpu.matmul %109, %108, %cst_92 {dimension_numbers = #tpu.dot_dimension_numbers<[1], [0], [0], [1], [0, 0, 1, 1], [], []>} : vector<16x32xf32>, vector<32x256xf32>, vector<16x256xf32> -> vector<16x256xf32>
    %111 = arith.addf %105, %110 : vector<16x256xf32>
    %c0_93 = arith.constant 0 : index
    %c33_94 = arith.constant 33 : index
    %112 = vector.load %arg10[%c0_93, %c33_94] : memref<32x290xf32, #tpu.memory_space<vmem>>, vector<32x256xf32>
    %c112_95 = arith.constant 112 : index
    %c0_96 = arith.constant 0 : index
    %113 = vector.load %arg4[%c112_95, %c0_96] : memref<144x32xf32, #tpu.memory_space<vmem>>, vector<16x32xf32>
    %cst_97 = arith.constant dense<0.000000e+00> : vector<16x256xf32>
    %114 = tpu.matmul %113, %112, %cst_97 {dimension_numbers = #tpu.dot_dimension_numbers<[1], [0], [0], [1], [0, 0, 1, 1], [], []>} : vector<16x32xf32>, vector<32x256xf32>, vector<16x256xf32> -> vector<16x256xf32>
    %115 = arith.addf %111, %114 : vector<16x256xf32>
    %c0_98 = arith.constant 0 : index
    %c34_99 = arith.constant 34 : index
    %116 = vector.load %arg10[%c0_98, %c34_99] : memref<32x290xf32, #tpu.memory_space<vmem>>, vector<32x256xf32>
    %117 = vector.broadcast %1 : vector<1x256xf32> to vector<32x256xf32>
    %118 = arith.mulf %116, %117 : vector<32x256xf32>
    %c128_100 = arith.constant 128 : index
    %c0_101 = arith.constant 0 : index
    %119 = vector.load %arg4[%c128_100, %c0_101] : memref<144x32xf32, #tpu.memory_space<vmem>>, vector<16x32xf32>
    %cst_102 = arith.constant dense<0.000000e+00> : vector<16x256xf32>
    %120 = tpu.matmul %119, %118, %cst_102 {dimension_numbers = #tpu.dot_dimension_numbers<[1], [0], [0], [1], [0, 0, 1, 1], [], []>} : vector<16x32xf32>, vector<32x256xf32>, vector<16x256xf32> -> vector<16x256xf32>
    %121 = arith.addf %115, %120 : vector<16x256xf32>
    %c48_103 = arith.constant 48 : index
    %c0_104 = arith.constant 0 : index
    %122 = vector.load %arg8[%c48_103, %c0_104] : memref<96x1xf32, #tpu.memory_space<vmem>>, vector<16x1xf32>
    %123 = vector.broadcast %122 : vector<16x1xf32> to vector<16x256xf32>
    %124 = arith.addf %121, %123 : vector<16x256xf32>
    %cst_105 = arith.constant 0.000000e+00 : f32
    %125 = vector.broadcast %cst_105 : f32 to vector<16x256xf32>
    %126 = arith.maximumf %124, %125 : vector<16x256xf32>
    %c0_106 = arith.constant 0 : index
    %c0_107 = arith.constant 0 : index
    %127 = vector.load %arg5[%c0_106, %c0_107] : memref<32x16xf32, #tpu.memory_space<vmem>>, vector<32x16xf32>
    %cst_108 = arith.constant dense<0.000000e+00> : vector<32x256xf32>
    %128 = tpu.matmul %127, %126, %cst_108 {dimension_numbers = #tpu.dot_dimension_numbers<[1], [0], [0], [1], [0, 0, 1, 1], [], []>} : vector<32x16xf32>, vector<16x256xf32>, vector<32x256xf32> -> vector<32x256xf32>
    %c64_109 = arith.constant 64 : index
    %c0_110 = arith.constant 0 : index
    %129 = vector.load %arg8[%c64_109, %c0_110] : memref<96x1xf32, #tpu.memory_space<vmem>>, vector<32x1xf32>
    %130 = vector.broadcast %129 : vector<32x1xf32> to vector<32x256xf32>
    %131 = arith.addf %128, %130 : vector<32x256xf32>
    %c0_111 = arith.constant 0 : index
    %c0_112 = arith.constant 0 : index
    %c0_113 = arith.constant 0 : index
    %132 = vector.load %arg9[%c0_111, %c0_112, %c0_113] : memref<1x32x256xf32, #tpu.memory_space<vmem>>, vector<1x32x256xf32>
    %133 = vector.shape_cast %132 : vector<1x32x256xf32> to vector<32x256xf32>
    %134 = vector.shape_cast %131 : vector<32x256xf32> to vector<1x32x256xf32>
    tpu.vector_store %arg9[%c0_111, %c0_112, %c0_113], %134 {strides = array<i32>} : memref<1x32x256xf32, #tpu.memory_space<vmem>>, vector<1x32x256xf32>,
    return
  }
  func.func @transform_0(%arg0: i32) -> (i32, i32, i32) {
    %c0_i32 = arith.constant 0 : i32
    %c0_i32_0 = arith.constant 0 : i32
    %c0_i32_1 = arith.constant 0 : i32
    return %arg0, %c0_i32, %c0_i32_0 : i32, i32, i32
  }
  func.func @transform_1(%arg0: i32) -> (i32, i32) {
    %c0_i32 = arith.constant 0 : i32
    %c0_i32_0 = arith.constant 0 : i32
    %c0_i32_1 = arith.constant 0 : i32
    return %c0_i32, %c0_i32_0 : i32, i32
  }
  func.func @transform_2(%arg0: i32) -> (i32, i32) {
    %c0_i32 = arith.constant 0 : i32
    %c0_i32_0 = arith.constant 0 : i32
    %c0_i32_1 = arith.constant 0 : i32
    return %c0_i32, %c0_i32_0 : i32, i32
  }
  func.func @transform_3(%arg0: i32) -> (i32, i32) {
    %c0_i32 = arith.constant 0 : i32
    %c0_i32_0 = arith.constant 0 : i32
    %c0_i32_1 = arith.constant 0 : i32
    return %c0_i32, %c0_i32_0 : i32, i32
  }
  func.func @transform_4(%arg0: i32) -> (i32, i32) {
    %c0_i32 = arith.constant 0 : i32
    %c0_i32_0 = arith.constant 0 : i32
    %c0_i32_1 = arith.constant 0 : i32
    return %c0_i32, %c0_i32_0 : i32, i32
  }
  func.func @transform_5(%arg0: i32) -> (i32, i32) {
    %c0_i32 = arith.constant 0 : i32
    %c0_i32_0 = arith.constant 0 : i32
    %c0_i32_1 = arith.constant 0 : i32
    return %c0_i32, %c0_i32_0 : i32, i32
  }
  func.func @transform_6(%arg0: i32) -> (i32, i32) {
    %c0_i32 = arith.constant 0 : i32
    %c0_i32_0 = arith.constant 0 : i32
    %c0_i32_1 = arith.constant 0 : i32
    return %c0_i32, %c0_i32_0 : i32, i32
  }
  func.func @transform_7(%arg0: i32) -> (i32, i32) {
    %c0_i32 = arith.constant 0 : i32
    %c0_i32_0 = arith.constant 0 : i32
    %c0_i32_1 = arith.constant 0 : i32
    return %c0_i32, %c0_i32_0 : i32, i32
  }
  func.func @transform_8(%arg0: i32) -> (i32, i32, i32) {
    %c0_i32 = arith.constant 0 : i32
    %c0_i32_0 = arith.constant 0 : i32
    %c0_i32_1 = arith.constant 0 : i32
    return %arg0, %c0_i32, %c0_i32_0 : i32, i32, i32
  }
}

</mosaic_0001>

<llo_original>
// kernel: tpu_custom_call.1
$region0: #{tpu_custom_call.1}
  #allocation0 [shape = 'u32[]', space=smem, size = 0x4, offset = 0x4, fixed_abs, tag = 'smem constant byte address 0x4 - core index']
  #allocation1 [shape = 'u32[72,128]{1,0:T(1,128)}', space=vmem, size = 0x9000, scoped, tag = 'internal scratch']
  #allocation2 [shape = 'f32[32,290]{1,0:T(8,128)}', space=vmem, size = 0xc000, scoped, tag = 'scratch operand']
  %s0 = inlined_call_operand.vmem [shape: f32[2,4,290], index: 0, kind: input, shape index: {}]
  %s1 = inlined_call_operand.vmem [shape: f32[144,4], index: 1, kind: input, shape index: {}]
  %s2 = inlined_call_operand.vmem [shape: f32[32,16], index: 2, kind: input, shape index: {}]
  %s3 = inlined_call_operand.vmem [shape: f32[144,32], index: 3, kind: input, shape index: {}]
  %s4 = inlined_call_operand.vmem [shape: f32[32,16], index: 4, kind: input, shape index: {}]
  %s5 = inlined_call_operand.vmem [shape: f32[1,256], index: 5, kind: input, shape index: {}]
  %s6 = inlined_call_operand.vmem [shape: f32[1,256], index: 6, kind: input, shape index: {}]
  %s7 = inlined_call_operand.vmem [shape: f32[96,1], index: 7, kind: input, shape index: {}]
  %s8 = inlined_call_operand.hbm [shape: f32[2,32,256], index: 8, kind: output, shape index: {}]
  %s9 = sld [smem:[#allocation0]]
  $region65: #{tpu_custom_call.1} parent=0
    _
  %s11 = ssub.s32 1, %s9
  %s12 = scalar_select 0, %s11, %s9
  $region1: #{tpu_custom_call.1} parent=0
    #allocation3 [shape = 'u8[65536]{0}', space=vmem, size = 0x10000, scoped, tag = 'output window, operand 0']
    #allocation4 [shape = 's32[2]{0}', space=sflag, size = 0x8, scoped, tag = 'scoped memory for tpu_custom_call.1']
    %13 = vsyncpa [#allocation4], 0
    %s14 = scalar_lea.sflag [#allocation4], 1
    %15 = vsyncpa %s14, 0
    loop: start=0, step=1, limit=4
    $region2: #{tpu_custom_call.1} parent=1 // loop_pre_header
      _
    $region3: #{tpu_custom_call.1} parent=1 // loop_header
      %s17 = sphi 0, %s21
      %p18 = scmp.ge.s32.totalorder %s17, 4
      %s27 = sphi 0, %s29
      %s30 = sphi 0, %s27
      %s31 = sphi 0, %s30
      %s47 = sphi 0, %s31
      %s51 = sphi 0, %s51
      %s53 = sphi 0, %s51
      %s54 = sphi 0, %s53
      %s68 = sphi 0, %s54
      %s72 = sphi 0, %s72
      %s74 = sphi 0, %s72
      %s75 = sphi 0, %s74
      %s89 = sphi 0, %s75
      %s93 = sphi 0, %s93
      %s95 = sphi 0, %s93
      %s96 = sphi 0, %s95
      %s110 = sphi 0, %s96
      %s114 = sphi 0, %s114
      %s116 = sphi 0, %s114
      %s117 = sphi 0, %s116
      %s131 = sphi 0, %s117
      %s135 = sphi 0, %s135
      %s137 = sphi 0, %s135
      %s138 = sphi 0, %s137
      %s152 = sphi 0, %s138
      %s156 = sphi 0, %s156
      %s158 = sphi 0, %s156
      %s159 = sphi 0, %s158
      %s173 = sphi 0, %s159
      %s177 = sphi 0, %s177
      %s179 = sphi 0, %s177
      %s180 = sphi 0, %s179
      %s194 = sphi 0, %s180
      %s200 = sphi 0, %s202
      %s203 = sphi 0, %s200
      %s204 = sphi 0, %s203
      %s220 = sphi 0, %s204
    $region4: #{tpu_custom_call.1} parent=1 // loop_header_branch
      %20 = sbr.rel (%p18) target = $region8
    $region5: #{tpu_custom_call.1} parent=1 // loop_body
      %s22 = ssub.s32 %s17, 1
      %s23 = ssub.s32 %s17, 2
      %s24 = sadd.s32 %s17, 1
      %s25 = ssub.s32 %s17, %s24
      %p26 = scmp.eq.s32.totalorder %s25, 0
      %s28 = sadd.s32 %s27, 1
      %s29 = scalar_select %p26, %s27, %s28
      %p32 = pneg %p26
      %p33 = scmp.eq.s32.totalorder %s17, 1
      %p34 = por %p32, %p33
      %p35 = scmp.ne.s32.totalorder %s27, %s30
      %p36 = scmp.eq.s32.totalorder %s17, 0
      %p37 = por %p35, %p36
      %p38 = scmp.ne.s32.totalorder %s27, %s30
      %p39 = scmp.eq.s32.totalorder %s22, 1
      %p40 = por %p38, %p39
      %p41 = scmp.ne.s32.totalorder %s30, %s31
      %p42 = scmp.eq.s32.totalorder %s22, 0
      %p43 = por %p41, %p42
      %p44 = scmp.ne.s32.totalorder %s30, %s31
      %p45 = scmp.eq.s32.totalorder %s23, 1
      %p46 = por %p44, %p45
      %p48 = scmp.ne.s32.totalorder %s31, %s47
      %p49 = scmp.eq.s32.totalorder %s23, 0
      %p50 = por %p48, %p49
      %s52 = sadd.s32 %s51, 1
      %p55 = scmp.eq.s32.totalorder %s17, 1
      %p56 = scmp.ne.s32.totalorder %s51, %s53
      %p57 = scmp.eq.s32.totalorder %s17, 0
      %p58 = por %p56, %p57
      %p59 = scmp.ne.s32.totalorder %s51, %s53
      %p60 = scmp.eq.s32.totalorder %s22, 1
      %p61 = por %p59, %p60
      %p62 = scmp.ne.s32.totalorder %s53, %s54
      %p63 = scmp.eq.s32.totalorder %s22, 0
      %p64 = por %p62, %p63
      %p65 = scmp.ne.s32.totalorder %s53, %s54
      %p66 = scmp.eq.s32.totalorder %s23, 1
      %p67 = por %p65, %p66
      %p69 = scmp.ne.s32.totalorder %s54, %s68
      %p70 = scmp.eq.s32.totalorder %s23, 0
      %p71 = por %p69, %p70
      %s73 = sadd.s32 %s72, 1
      %p76 = scmp.eq.s32.totalorder %s17, 1
      %p77 = scmp.ne.s32.totalorder %s72, %s74
      %p78 = scmp.eq.s32.totalorder %s17, 0
      %p79 = por %p77, %p78
      %p80 = scmp.ne.s32.totalorder %s72, %s74
      %p81 = scmp.eq.s32.totalorder %s22, 1
      %p82 = por %p80, %p81
      %p83 = scmp.ne.s32.totalorder %s74, %s75
      %p84 = scmp.eq.s32.totalorder %s22, 0
      %p85 = por %p83, %p84
      %p86 = scmp.ne.s32.totalorder %s74, %s75
      %p87 = scmp.eq.s32.totalorder %s23, 1
      %p88 = por %p86, %p87
      %p90 = scmp.ne.s32.totalorder %s75, %s89
      %p91 = scmp.eq.s32.totalorder %s23, 0
      %p92 = por %p90, %p91
      %s94 = sadd.s32 %s93, 1
      %p97 = scmp.eq.s32.totalorder %s17, 1
      %p98 = scmp.ne.s32.totalorder %s93, %s95
      %p99 = scmp.eq.s32.totalorder %s17, 0
      %p100 = por %p98, %p99
      %p101 = scmp.ne.s32.totalorder %s93, %s95
      %p102 = scmp.eq.s32.totalorder %s22, 1
      %p103 = por %p101, %p102
      %p104 = scmp.ne.s32.totalorder %s95, %s96
      %p105 = scmp.eq.s32.totalorder %s22, 0
      %p106 = por %p104, %p105
      %p107 = scmp.ne.s32.totalorder %s95, %s96
      %p108 = scmp.eq.s32.totalorder %s23, 1
      %p109 = por %p107, %p108
      %p111 = scmp.ne.s32.totalorder %s96, %s110
      %p112 = scmp.eq.s32.totalorder %s23, 0
      %p113 = por %p111, %p112
      %s115 = sadd.s32 %s114, 1
      %p118 = scmp.eq.s32.totalorder %s17, 1
      %p119 = scmp.ne.s32.totalorder %s114, %s116
      %p120 = scmp.eq.s32.totalorder %s17, 0
      %p121 = por %p119, %p120
      %p122 = scmp.ne.s32.totalorder %s114, %s116
      %p123 = scmp.eq.s32.totalorder %s22, 1
      %p124 = por %p122, %p123
      %p125 = scmp.ne.s32.totalorder %s116, %s117
      %p126 = scmp.eq.s32.totalorder %s22, 0
      %p127 = por %p125, %p126
      %p128 = scmp.ne.s32.totalorder %s116, %s117
      %p129 = scmp.eq.s32.totalorder %s23, 1
      %p130 = por %p128, %p129
      %p132 = scmp.ne.s32.totalorder %s117, %s131
      %p133 = scmp.eq.s32.totalorder %s23, 0
      %p134 = por %p132, %p133
      %s136 = sadd.s32 %s135, 1
      %p139 = scmp.eq.s32.totalorder %s17, 1
      %p140 = scmp.ne.s32.totalorder %s135, %s137
      %p141 = scmp.eq.s32.totalorder %s17, 0
      %p142 = por %p140, %p141
      %p143 = scmp.ne.s32.totalorder %s135, %s137
      %p144 = scmp.eq.s32.totalorder %s22, 1
      %p145 = por %p143, %p144
      %p146 = scmp.ne.s32.totalorder %s137, %s138
      %p147 = scmp.eq.s32.totalorder %s22, 0
      %p148 = por %p146, %p147
      %p149 = scmp.ne.s32.totalorder %s137, %s138
      %p150 = scmp.eq.s32.totalorder %s23, 1
      %p151 = por %p149, %p150
      %p153 = scmp.ne.s32.totalorder %s138, %s152
      %p154 = scmp.eq.s32.totalorder %s23, 0
      %p155 = por %p153, %p154
      %s157 = sadd.s32 %s156, 1
      %p160 = scmp.eq.s32.totalorder %s17, 1
      %p161 = scmp.ne.s32.totalorder %s156, %s158
      %p162 = scmp.eq.s32.totalorder %s17, 0
      %p163 = por %p161, %p162
      %p164 = scmp.ne.s32.totalorder %s156, %s158
      %p165 = scmp.eq.s32.totalorder %s22, 1
      %p166 = por %p164, %p165
      %p167 = scmp.ne.s32.totalorder %s158, %s159
      %p168 = scmp.eq.s32.totalorder %s22, 0
      %p169 = por %p167, %p168
      %p170 = scmp.ne.s32.totalorder %s158, %s159
      %p171 = scmp.eq.s32.totalorder %s23, 1
      %p172 = por %p170, %p171
      %p174 = scmp.ne.s32.totalorder %s159, %s173
      %p175 = scmp.eq.s32.totalorder %s23, 0
      %p176 = por %p174, %p175
      %s178 = sadd.s32 %s177, 1
      %p181 = scmp.eq.s32.totalorder %s17, 1
      %p182 = scmp.ne.s32.totalorder %s177, %s179
      %p183 = scmp.eq.s32.totalorder %s17, 0
      %p184 = por %p182, %p183
      %p185 = scmp.ne.s32.totalorder %s177, %s179
      %p186 = scmp.eq.s32.totalorder %s22, 1
      %p187 = por %p185, %p186
      %p188 = scmp.ne.s32.totalorder %s179, %s180
      %p189 = scmp.eq.s32.totalorder %s22, 0
      %p190 = por %p188, %p189
      %p191 = scmp.ne.s32.totalorder %s179, %s180
      %p192 = scmp.eq.s32.totalorder %s23, 1
      %p193 = por %p191, %p192
      %p195 = scmp.ne.s32.totalorder %s180, %s194
      %p196 = scmp.eq.s32.totalorder %s23, 0
      %p197 = por %p195, %p196
      %s198 = ssub.s32 %s17, %s24
      %p199 = scmp.eq.s32.totalorder %s198, 0
      %s201 = sadd.s32 %s200, 1
      %s202 = scalar_select %p199, %s200, %s201
      %p205 = pneg %p199
      %p206 = scmp.eq.s32.totalorder %s17, 1
      %p207 = por %p205, %p206
      %p208 = scmp.ne.s32.totalorder %s200, %s203
      %p209 = scmp.eq.s32.totalorder %s17, 0
      %p210 = por %p208, %p209
      %p211 = scmp.ne.s32.totalorder %s200, %s203
      %p212 = scmp.eq.s32.totalorder %s22, 1
      %p213 = por %p211, %p212
      %p214 = scmp.ne.s32.totalorder %s203, %s204
      %p215 = scmp.eq.s32.totalorder %s22, 0
      %p216 = por %p214, %p215
      %p217 = scmp.ne.s32.totalorder %s203, %s204
      %p218 = scmp.eq.s32.totalorder %s23, 1
      %p219 = por %p217, %p218
      %p221 = scmp.ne.s32.totalorder %s204, %s220
      %p222 = scmp.eq.s32.totalorder %s23, 0
      %p223 = por %p221, %p222
      %p224 = scmp.le.s32.totalorder 1, %s17
      %p225 = scmp.lt.s32.totalorder %s17, 3
      %p226 = pnand %p224, %p225
      %p227 = pneg %p226
      // Predicated region
      $region9: #{tpu_custom_call.1} parent=5 // pred_check
        _
      $region10: #{tpu_custom_call.1} parent=5 // pred_check_branch
        %229 = sbr.rel (%p226) target = $region12
      $region11: #{tpu_custom_call.1} parent=5 // pred_region
        %s230 = ssub.s32 %s17, 1
        // Predicated region
        $region13: #{tpu_custom_call.1} parent=11 // pred_check
          %p231 = pneg %p64
        $region14: #{tpu_custom_call.1} parent=11 // pred_check_branch
          %233 = sbr.rel (%p231) target = $region16
        $region15: #{tpu_custom_call.1} parent=11 // pred_region
          _
        $region16: #{tpu_custom_call.1} parent=11 // pred_fallthru
          _
        // Predicated region
        $region17: #{tpu_custom_call.1} parent=11 // pred_check
          %p234 = pneg %p85
        $region18: #{tpu_custom_call.1} parent=11 // pred_check_branch
          %236 = sbr.rel (%p234) target = $region20
        $region19: #{tpu_custom_call.1} parent=11 // pred_region
          _
        $region20: #{tpu_custom_call.1} parent=11 // pred_fallthru
          _
        // Predicated region
        $region21: #{tpu_custom_call.1} parent=11 // pred_check
          %p237 = pneg %p106
        $region22: #{tpu_custom_call.1} parent=11 // pred_check_branch
          %239 = sbr.rel (%p237) target = $region24
        $region23: #{tpu_custom_call.1} parent=11 // pred_region
          _
        $region24: #{tpu_custom_call.1} parent=11 // pred_fallthru
          _
        // Predicated region
        $region25: #{tpu_custom_call.1} parent=11 // pred_check
          %p240 = pneg %p127
        $region26: #{tpu_custom_call.1} parent=11 // pred_check_branch
          %242 = sbr.rel (%p240) target = $region28
        $region27: #{tpu_custom_call.1} parent=11 // pred_region
          _
        $region28: #{tpu_custom_call.1} parent=11 // pred_fallthru
          _
        // Predicated region
        $region29: #{tpu_custom_call.1} parent=11 // pred_check
          %p243 = pneg %p148
        $region30: #{tpu_custom_call.1} parent=11 // pred_check_branch
          %245 = sbr.rel (%p243) target = $region32
        $region31: #{tpu_custom_call.1} parent=11 // pred_region
          _
        $region32: #{tpu_custom_call.1} parent=11 // pred_fallthru
          _
        // Predicated region
        $region33: #{tpu_custom_call.1} parent=11 // pred_check
          %p246 = pneg %p169
        $region34: #{tpu_custom_call.1} parent=11 // pred_check_branch
          %248 = sbr.rel (%p246) target = $region36
        $region35: #{tpu_custom_call.1} parent=11 // pred_region
          _
        $region36: #{tpu_custom_call.1} parent=11 // pred_fallthru
          _
        // Predicated region
        $region37: #{tpu_custom_call.1} parent=11 // pred_check
          %p249 = pneg %p190
        $region38: #{tpu_custom_call.1} parent=11 // pred_check_branch
          %251 = sbr.rel (%p249) target = $region40
        $region39: #{tpu_custom_call.1} parent=11 // pred_region
          _
        $region40: #{tpu_custom_call.1} parent=11 // pred_fallthru
          _
      $region12: #{tpu_custom_call.1} parent=5 // pred_fallthru
        _
      %p252 = scmp.lt.s32.totalorder %s17, 2
      // Predicated region
      $region41: #{tpu_custom_call.1} parent=5 // pred_check
        %p253 = pneg %p252
      $region42: #{tpu_custom_call.1} parent=5 // pred_check_branch
        %255 = sbr.rel (%p253) target = $region44
      $region43: #{tpu_custom_call.1} parent=5 // pred_region
        // Predicated region
        $region45: #{tpu_custom_call.1} parent=43 // pred_check
          %p256 = pneg %p37
        $region46: #{tpu_custom_call.1} parent=43 // pred_check_branch
          %258 = sbr.rel (%p256) target = $region48
        $region47: #{tpu_custom_call.1} parent=43 // pred_region
          %p259 = scmp.lt.s32.totalorder %s17, 1
          %s260 = scalar_select %p259, %s17, 1
          %s261 = smul.addr %s260, 3
          %s262 = smul.addr %s261, 4
          %s263 = scalar_lea.vmem %s0, %s262
        $region48: #{tpu_custom_call.1} parent=43 // pred_fallthru
          _
      $region44: #{tpu_custom_call.1} parent=5 // pred_fallthru
        _
      %p264 = scmp.le.s32.totalorder 1, %s17
      %p265 = scmp.lt.s32.totalorder %s17, 3
      %p266 = pnand %p264, %p265
      %p267 = pneg %p266
      // Predicated region
      $region49: #{tpu_custom_call.1} parent=5 // pred_check
        _
      $region50: #{tpu_custom_call.1} parent=5 // pred_check_branch
        %269 = sbr.rel (%p266) target = $region52
      $region51: #{tpu_custom_call.1} parent=5 // pred_region
        %s270 = ssub.s32 %s17, 1
        %p271 = scmp.lt.s32.totalorder %s22, 1
        %s272 = scalar_select %p271, %s22, 1
        %s273 = smul.addr %s272, 3
        %s274 = smul.addr %s273, 4
        %s275 = scalar_lea.vmem %s0, %s274
        %p276 = pneg %p43
        %p277 = pneg %p40
        %p278 = pneg %p64
        %p279 = pneg %p61
        %p280 = pneg %p85
        %p281 = pneg %p82
        %p282 = pneg %p106
        %p283 = pneg %p103
        %p284 = pneg %p127
        %p285 = pneg %p124
        %p286 = pneg %p148
        %p287 = pneg %p145
        %p288 = pneg %p169
        %p289 = pneg %p166
        %p290 = pneg %p190
        %p291 = pneg %p187
        %p292 = pneg %p216
        %p293 = pneg %p213
        %s294 = sand.u32 %s203, 1
        %s295 = scalar_lea.sflag [#allocation4], %s294
        %s296 = sand.u32 %s203, 1
        %s297 = smul.addr %s296, 64
        %s298 = scalar_lea.vmem [#allocation3], %s297
        %p299 = scmp.lt.s32.totalorder %s22, 1
        %s300 = scalar_select %p299, %s22, 1
        %s301 = smul.addr %s300, 3
        %s302 = smul.addr %s301, 4
        %s303 = scalar_lea.vmem %s0, %s302
        %v304 = vld [vmem:[%s5] sm:$0x3]
        %v305 = vld [vmem:[%s6] sm:$0x3]
        %v306 = vld [vmem:[%s303] sm:$0xff]
        %v308 = vperm.slane %v304, 0
        %v309 = vperm.slane %v304, 1
        %v310 = vrot.slane %v309, 4
        %vm311 = vcmask 1043456
        %v312 = vsel %vm311, %v308, %v310
        %v314 = vmul.f32 %v306, %v312
        %v315 = vld [vmem:[%s1] sm:$0xff]
        %v316 = vld [vmem:[%s1 + $0x8] sm:$0xff]
        %v317 = vld [vmem:[%s303 + $0x8] sm:$0xf]
        %v318 = vld [vmem:[%s1 + $0x10] sm:$0xff]
        %v319 = vld [vmem:[%s1 + $0x18] sm:$0xff]
        %322 = vst [vmem:[#allocation1] ss:$2 sm:$0xff] %v306
        %s323 = scalar_lea.vmem [#allocation1], 16
        %324 = vst [vmem:[%s323] ss:$2 sm:$0xff] %v317
        %v325 = vld.sshfl [vmem:[#allocation1] sm:$0xff pattern:$0x75316420]
        %v326 = vld.sshfl [vmem:[#allocation1 + $0x8] sm:$0xff pattern:$0x75316420]
        %v327 = vld.sshfl [vmem:[#allocation1 + $0x10] sm:$0xff pattern:$0x75316420]
        %328 = vrot.lane.b32.xlu0 %v325, 127
        %v329 = vpop.permute.xlu0 %328
        %330 = vrot.lane.b32.xlu0 %v326, 127
        %v331 = vpop.permute.xlu0 %330
        %332 = vrot.lane.b32.xlu0 %v327, 127
        %v333 = vpop.permute.xlu0 %332
        %vm334 = vcmask 1039360
        %v335 = vsel %vm334, %v329, %v331
        %v336 = vsel %vm334, %v331, %v333
        %vm337 = vcmask 31744
        %v339 = vsel %vm337, %v318, 0
        %v342 = vsel %vm337, %v319, 0
        %v344 = vsel %vm311, %v335, 0
        %v346 = vsel %vm311, %v336, 0
        %348 = vmatpush.msra.mxu0 0.0
        %349 = vmatpush.msra.mxu0 0.0
        %350 = vmatpush.msra.mxu0 0.0
        %351 = vmatpush.msra.mxu0 0.0
        %352 = vmatpush.msra.mxu0 0.0
        %353 = vmatpush.msra.mxu0 0.0
        %354 = vmatpush.msra.mxu0 0.0
        %355 = vmatpush.msra.mxu0 0.0
        %356 = vmatpush.msra.mxu0 0.0
        %357 = vmatpush.msra.mxu0 0.0
        %358 = vmatpush.msra.mxu0 0.0
        %359 = vmatpush.msra.mxu0 0.0
        %360 = vmatpush.msra.mxu0 0.0
        %361 = vmatpush.msra.mxu0 0.0
        %362 = vmatpush.msra.mxu0 0.0
        %363 = vmatpush.msra.mxu0 %v344
        %364 = vmatmul.f32.gmra.mxu0 %v339
        %v365 = vpop.f32.mrf.mxu0
        %v366 = vadd.f32 0.0, %v365
        %367 = vmatmul.f32.gmra.mxu0 %v342
        %v368 = vpop.f32.mrf.mxu0
        %v369 = vadd.f32 0.0, %v368
        %370 = vdwg.mxu0
        %371 = vmatpush.msra.mxu0 0.0
        %372 = vmatpush.msra.mxu0 0.0
        %373 = vmatpush.msra.mxu0 0.0
        %374 = vmatpush.msra.mxu0 0.0
        %375 = vmatpush.msra.mxu0 0.0
        %376 = vmatpush.msra.mxu0 0.0
        %377 = vmatpush.msra.mxu0 0.0
        %378 = vmatpush.msra.mxu0 0.0
        %379 = vmatpush.msra.mxu0 0.0
        %380 = vmatpush.msra.mxu0 0.0
        %381 = vmatpush.msra.mxu0 0.0
        %382 = vmatpush.msra.mxu0 0.0
        %383 = vmatpush.msra.mxu0 0.0
        %384 = vmatpush.msra.mxu0 0.0
        %385 = vmatpush.msra.mxu0 0.0
        %386 = vmatpush.msra.mxu0 %v346
        %387 = vmatmul.f32.gmra.mxu0 %v339
        %v388 = vpop.f32.mrf.mxu0
        %v389 = vadd.f32 0.0, %v388
        %390 = vmatmul.f32.gmra.mxu0 %v342
        %v391 = vpop.f32.mrf.mxu0
        %v392 = vadd.f32 0.0, %v391
        %393 = vdwg.mxu0
        %395 = vst [vmem:[#allocation1] ss:$2 sm:$0xff] %v314
        %v396 = vld.sshfl [vmem:[#allocation1] sm:$0xff pattern:$0x75316420]
        %v397 = vld.sshfl [vmem:[#allocation1 + $0x8] sm:$0xff pattern:$0x75316420]
        %v399 = vsel %vm337, %v315, 0
        %v402 = vsel %vm337, %v316, 0
        %v404 = vsel %vm311, %v396, 0
        %v406 = vsel %vm311, %v397, 0
        %408 = vmatpush.msra.mxu0 0.0
        %409 = vmatpush.msra.mxu0 0.0
        %410 = vmatpush.msra.mxu0 0.0
        %411 = vmatpush.msra.mxu0 0.0
        %412 = vmatpush.msra.mxu0 0.0
        %413 = vmatpush.msra.mxu0 0.0
        %414 = vmatpush.msra.mxu0 0.0
        %415 = vmatpush.msra.mxu0 0.0
        %416 = vmatpush.msra.mxu0 0.0
        %417 = vmatpush.msra.mxu0 0.0
        %418 = vmatpush.msra.mxu0 0.0
        %419 = vmatpush.msra.mxu0 0.0
        %420 = vmatpush.msra.mxu0 0.0
        %421 = vmatpush.msra.mxu0 0.0
        %422 = vmatpush.msra.mxu0 0.0
        %423 = vmatpush.msra.mxu0 %v404
        %424 = vmatmul.f32.gmra.mxu0 %v399
        %v425 = vpop.f32.mrf.mxu0
        %v426 = vadd.f32 %v366, %v425
        %427 = vmatmul.f32.gmra.mxu0 %v402
        %v428 = vpop.f32.mrf.mxu0
        %v429 = vadd.f32 %v369, %v428
        %430 = vdwg.mxu0
        %431 = vmatpush.msra.mxu0 0.0
        %432 = vmatpush.msra.mxu0 0.0
        %433 = vmatpush.msra.mxu0 0.0
        %434 = vmatpush.msra.mxu0 0.0
        %435 = vmatpush.msra.mxu0 0.0
        %436 = vmatpush.msra.mxu0 0.0
        %437 = vmatpush.msra.mxu0 0.0
        %438 = vmatpush.msra.mxu0 0.0
        %439 = vmatpush.msra.mxu0 0.0
        %440 = vmatpush.msra.mxu0 0.0
        %441 = vmatpush.msra.mxu0 0.0
        %442 = vmatpush.msra.mxu0 0.0
        %443 = vmatpush.msra.mxu0 0.0
        %444 = vmatpush.msra.mxu0 0.0
        %445 = vmatpush.msra.mxu0 0.0
        %446 = vmatpush.msra.mxu0 %v406
        %447 = vmatmul.f32.gmra.mxu0 %v399
        %v448 = vpop.f32.mrf.mxu0
        %v449 = vadd.f32 %v389, %v448
        %450 = vmatmul.f32.gmra.mxu0 %v402
        %v451 = vpop.f32.mrf.mxu0
        %v452 = vadd.f32 %v392, %v451
        %453 = vdwg.mxu0
        %v454 = vld [vmem:[%s303] sm:$0xff]
        %v455 = vld [vmem:[%s303 + $0x8] sm:$0xf]
        %v457 = vperm.slane %v305, 0
        %v458 = vperm.slane %v305, 1
        %v459 = vrot.slane %v458, 4
        %v460 = vsel %vm311, %v457, %v459
        %461 = vrot.lane.b32.xlu0 %v460, 2
        %v462 = vpop.permute.xlu0 %461
        %v463 = vrot.slane %v462, 4
        %vm464 = vcmask 15360
        %v465 = vsel %vm464, %v463, %v462
        %v468 = vmul.f32 %v454, %v465
        %v469 = vmul.f32 %v455, %v463
        %v470 = vld [vmem:[%s1 + $0x20] sm:$0xff]
        %v471 = vld [vmem:[%s1 + $0x28] sm:$0xff]
        %474 = vst [vmem:[#allocation1] ss:$2 sm:$0xff] %v468
        %s475 = scalar_lea.vmem [#allocation1], 16
        %476 = vst [vmem:[%s475] ss:$2 sm:$0xff] %v469
        %v477 = vld.sshfl [vmem:[#allocation1] sm:$0xff pattern:$0x75316420]
        %v478 = vld.sshfl [vmem:[#allocation1 + $0x8] sm:$0xff pattern:$0x75316420]
        %v479 = vld.sshfl [vmem:[#allocation1 + $0x10] sm:$0xff pattern:$0x75316420]
        %480 = vrot.lane.b32.xlu0 %v477, 126
        %v481 = vpop.permute.xlu0 %480
        %482 = vrot.lane.b32.xlu0 %v478, 126
        %v483 = vpop.permute.xlu0 %482
        %484 = vrot.lane.b32.xlu0 %v479, 126
        %v485 = vpop.permute.xlu0 %484
        %vm486 = vcmask 1031168
        %v487 = vsel %vm486, %v481, %v483
        %v488 = vsel %vm486, %v483, %v485
        %v490 = vsel %vm337, %v470, 0
        %v493 = vsel %vm337, %v471, 0
        %v495 = vsel %vm311, %v487, 0
        %v497 = vsel %vm311, %v488, 0
        %499 = vmatpush.msra.mxu0 0.0
        %500 = vmatpush.msra.mxu0 0.0
        %501 = vmatpush.msra.mxu0 0.0
        %502 = vmatpush.msra.mxu0 0.0
        %503 = vmatpush.msra.mxu0 0.0
        %504 = vmatpush.msra.mxu0 0.0
        %505 = vmatpush.msra.mxu0 0.0
        %506 = vmatpush.msra.mxu0 0.0
        %507 = vmatpush.msra.mxu0 0.0
        %508 = vmatpush.msra.mxu0 0.0
        %509 = vmatpush.msra.mxu0 0.0
        %510 = vmatpush.msra.mxu0 0.0
        %511 = vmatpush.msra.mxu0 0.0
        %512 = vmatpush.msra.mxu0 0.0
        %513 = vmatpush.msra.mxu0 0.0
        %514 = vmatpush.msra.mxu0 %v495
        %515 = vmatmul.f32.gmra.mxu0 %v490
        %v516 = vpop.f32.mrf.mxu0
        %v517 = vadd.f32 0.0, %v516
        %518 = vmatmul.f32.gmra.mxu0 %v493
        %v519 = vpop.f32.mrf.mxu0
        %v520 = vadd.f32 0.0, %v519
        %521 = vdwg.mxu0
        %522 = vmatpush.msra.mxu0 0.0
        %523 = vmatpush.msra.mxu0 0.0
        %524 = vmatpush.msra.mxu0 0.0
        %525 = vmatpush.msra.mxu0 0.0
        %526 = vmatpush.msra.mxu0 0.0
        %527 = vmatpush.msra.mxu0 0.0
        %528 = vmatpush.msra.mxu0 0.0
        %529 = vmatpush.msra.mxu0 0.0
        %530 = vmatpush.msra.mxu0 0.0
        %531 = vmatpush.msra.mxu0 0.0
        %532 = vmatpush.msra.mxu0 0.0
        %533 = vmatpush.msra.mxu0 0.0
        %534 = vmatpush.msra.mxu0 0.0
        %535 = vmatpush.msra.mxu0 0.0
        %536 = vmatpush.msra.mxu0 0.0
        %537 = vmatpush.msra.mxu0 %v497
        %538 = vmatmul.f32.gmra.mxu0 %v490
        %v539 = vpop.f32.mrf.mxu0
        %v540 = vadd.f32 0.0, %v539
        %541 = vmatmul.f32.gmra.mxu0 %v493
        %v542 = vpop.f32.mrf.mxu0
        %v543 = vadd.f32 0.0, %v542
        %544 = vdwg.mxu0
        %v545 = vadd.f32 %v426, %v517
        %v546 = vadd.f32 %v449, %v540
        %v547 = vadd.f32 %v429, %v520
        %v548 = vadd.f32 %v452, %v543
        %v549 = vld [vmem:[%s303] sm:$0xff]
        %v550 = vld [vmem:[%s303 + $0x8] sm:$0xf]
        %551 = vrot.lane.b32.xlu0 %v312, 16
        %v552 = vpop.permute.xlu0 %551
        %v553 = vrot.slane %v552, 4
        %vm554 = vcmask 130048
        %v555 = vsel %vm554, %v553, %v552
        %v558 = vmul.f32 %v549, %v555
        %v559 = vmul.f32 %v550, %v553
        %v560 = vld [vmem:[%s1 + $0x30] sm:$0xff]
        %v561 = vld [vmem:[%s1 + $0x38] sm:$0xff]
        %564 = vst [vmem:[#allocation1] ss:$2 sm:$0xff] %v558
        %s565 = scalar_lea.vmem [#allocation1], 16
        %566 = vst [vmem:[%s565] ss:$2 sm:$0xff] %v559
        %v567 = vld.sshfl [vmem:[#allocation1] sm:$0xff pattern:$0x75316420]
        %v568 = vld.sshfl [vmem:[#allocation1 + $0x8] sm:$0xff pattern:$0x75316420]
        %v569 = vld.sshfl [vmem:[#allocation1 + $0x10] sm:$0xff pattern:$0x75316420]
        %570 = vrot.lane.b32.xlu0 %v567, 112
        %v571 = vpop.permute.xlu0 %570
        %572 = vrot.lane.b32.xlu0 %v568, 112
        %v573 = vpop.permute.xlu0 %572
        %574 = vrot.lane.b32.xlu0 %v569, 112
        %v575 = vpop.permute.xlu0 %574
        %vm576 = vcmask 916480
        %v577 = vsel %vm576, %v571, %v573
        %v578 = vsel %vm576, %v573, %v575
        %v580 = vsel %vm337, %v560, 0
        %v583 = vsel %vm337, %v561, 0
        %v585 = vsel %vm311, %v577, 0
        %v587 = vsel %vm311, %v578, 0
        %589 = vmatpush.msra.mxu0 0.0
        %590 = vmatpush.msra.mxu0 0.0
        %591 = vmatpush.msra.mxu0 0.0
        %592 = vmatpush.msra.mxu0 0.0
        %593 = vmatpush.msra.mxu0 0.0
        %594 = vmatpush.msra.mxu0 0.0
        %595 = vmatpush.msra.mxu0 0.0
        %596 = vmatpush.msra.mxu0 0.0
        %597 = vmatpush.msra.mxu0 0.0
        %598 = vmatpush.msra.mxu0 0.0
        %599 = vmatpush.msra.mxu0 0.0
        %600 = vmatpush.msra.mxu0 0.0
        %601 = vmatpush.msra.mxu0 0.0
        %602 = vmatpush.msra.mxu0 0.0
        %603 = vmatpush.msra.mxu0 0.0
        %604 = vmatpush.msra.mxu0 %v585
        %605 = vmatmul.f32.gmra.mxu0 %v580
        %v606 = vpop.f32.mrf.mxu0
        %v607 = vadd.f32 0.0, %v606
        %608 = vmatmul.f32.gmra.mxu0 %v583
        %v609 = vpop.f32.mrf.mxu0
        %v610 = vadd.f32 0.0, %v609
        %611 = vdwg.mxu0
        %612 = vmatpush.msra.mxu0 0.0
        %613 = vmatpush.msra.mxu0 0.0
        %614 = vmatpush.msra.mxu0 0.0
        %615 = vmatpush.msra.mxu0 0.0
        %616 = vmatpush.msra.mxu0 0.0
        %617 = vmatpush.msra.mxu0 0.0
        %618 = vmatpush.msra.mxu0 0.0
        %619 = vmatpush.msra.mxu0 0.0
        %620 = vmatpush.msra.mxu0 0.0
        %621 = vmatpush.msra.mxu0 0.0
        %622 = vmatpush.msra.mxu0 0.0
        %623 = vmatpush.msra.mxu0 0.0
        %624 = vmatpush.msra.mxu0 0.0
        %625 = vmatpush.msra.mxu0 0.0
        %626 = vmatpush.msra.mxu0 0.0
        %627 = vmatpush.msra.mxu0 %v587
        %628 = vmatmul.f32.gmra.mxu0 %v580
        %v629 = vpop.f32.mrf.mxu0
        %v630 = vadd.f32 0.0, %v629
        %631 = vmatmul.f32.gmra.mxu0 %v583
        %v632 = vpop.f32.mrf.mxu0
        %v633 = vadd.f32 0.0, %v632
        %634 = vdwg.mxu0
        %v635 = vadd.f32 %v545, %v607
        %v636 = vadd.f32 %v546, %v630
        %v637 = vadd.f32 %v547, %v610
        %v638 = vadd.f32 %v548, %v633
        %v639 = vld [vmem:[%s303] sm:$0xff]
        %v640 = vld [vmem:[%s303 + $0x8] sm:$0xf]
        %v641 = vld [vmem:[%s1 + $0x40] sm:$0xff]
        %v642 = vld [vmem:[%s1 + $0x48] sm:$0xff]
        %645 = vst [vmem:[#allocation1] ss:$2 sm:$0xff] %v639
        %s646 = scalar_lea.vmem [#allocation1], 16
        %647 = vst [vmem:[%s646] ss:$2 sm:$0xff] %v640
        %v648 = vld.sshfl [vmem:[#allocation1] sm:$0xff pattern:$0x75316420]
        %v649 = vld.sshfl [vmem:[#allocation1 + $0x8] sm:$0xff pattern:$0x75316420]
        %v650 = vld.sshfl [vmem:[#allocation1 + $0x10] sm:$0xff pattern:$0x75316420]
        %651 = vrot.lane.b32.xlu0 %v648, 111
        %v652 = vpop.permute.xlu0 %651
        %653 = vrot.lane.b32.xlu0 %v649, 111
        %v654 = vpop.permute.xlu0 %653
        %655 = vrot.lane.b32.xlu0 %v650, 111
        %v656 = vpop.permute.xlu0 %655
        %vm657 = vcmask 908288
        %v658 = vsel %vm657, %v652, %v654
        %v659 = vsel %vm657, %v654, %v656
        %v661 = vsel %vm337, %v641, 0
        %v664 = vsel %vm337, %v642, 0
        %v666 = vsel %vm311, %v658, 0
        %v668 = vsel %vm311, %v659, 0
        %670 = vmatpush.msra.mxu0 0.0
        %671 = vmatpush.msra.mxu0 0.0
        %672 = vmatpush.msra.mxu0 0.0
        %673 = vmatpush.msra.mxu0 0.0
        %674 = vmatpush.msra.mxu0 0.0
        %675 = vmatpush.msra.mxu0 0.0
        %676 = vmatpush.msra.mxu0 0.0
        %677 = vmatpush.msra.mxu0 0.0
        %678 = vmatpush.msra.mxu0 0.0
        %679 = vmatpush.msra.mxu0 0.0
        %680 = vmatpush.msra.mxu0 0.0
        %681 = vmatpush.msra.mxu0 0.0
        %682 = vmatpush.msra.mxu0 0.0
        %683 = vmatpush.msra.mxu0 0.0
        %684 = vmatpush.msra.mxu0 0.0
        %685 = vmatpush.msra.mxu0 %v666
        %686 = vmatmul.f32.gmra.mxu0 %v661
        %v687 = vpop.f32.mrf.mxu0
        %v688 = vadd.f32 0.0, %v687
        %689 = vmatmul.f32.gmra.mxu0 %v664
        %v690 = vpop.f32.mrf.mxu0
        %v691 = vadd.f32 0.0, %v690
        %692 = vdwg.mxu0
        %693 = vmatpush.msra.mxu0 0.0
        %694 = vmatpush.msra.mxu0 0.0
        %695 = vmatpush.msra.mxu0 0.0
        %696 = vmatpush.msra.mxu0 0.0
        %697 = vmatpush.msra.mxu0 0.0
        %698 = vmatpush.msra.mxu0 0.0
        %699 = vmatpush.msra.mxu0 0.0
        %700 = vmatpush.msra.mxu0 0.0
        %701 = vmatpush.msra.mxu0 0.0
        %702 = vmatpush.msra.mxu0 0.0
        %703 = vmatpush.msra.mxu0 0.0
        %704 = vmatpush.msra.mxu0 0.0
        %705 = vmatpush.msra.mxu0 0.0
        %706 = vmatpush.msra.mxu0 0.0
        %707 = vmatpush.msra.mxu0 0.0
        %708 = vmatpush.msra.mxu0 %v668
        %709 = vmatmul.f32.gmra.mxu0 %v661
        %v710 = vpop.f32.mrf.mxu0
        %v711 = vadd.f32 0.0, %v710
        %712 = vmatmul.f32.gmra.mxu0 %v664
        %v713 = vpop.f32.mrf.mxu0
        %v714 = vadd.f32 0.0, %v713
        %715 = vdwg.mxu0
        %v716 = vadd.f32 %v635, %v688
        %v717 = vadd.f32 %v636, %v711
        %v718 = vadd.f32 %v637, %v691
        %v719 = vadd.f32 %v638, %v714
        %v720 = vld [vmem:[%s303] sm:$0xff]
        %v721 = vld [vmem:[%s303 + $0x8] sm:$0xf]
        %722 = vrot.lane.b32.xlu0 %v460, 18
        %v723 = vpop.permute.xlu0 %722
        %v724 = vrot.slane %v723, 4
        %vm725 = vcmask 146432
        %v726 = vsel %vm725, %v724, %v723
        %v729 = vmul.f32 %v720, %v726
        %v730 = vmul.f32 %v721, %v724
        %v731 = vld [vmem:[%s1 + $0x50] sm:$0xff]
        %v732 = vld [vmem:[%s1 + $0x58] sm:$0xff]
        %735 = vst [vmem:[#allocation1] ss:$2 sm:$0xff] %v729
        %s736 = scalar_lea.vmem [#allocation1], 16
        %737 = vst [vmem:[%s736] ss:$2 sm:$0xff] %v730
        %v738 = vld.sshfl [vmem:[#allocation1] sm:$0xff pattern:$0x75316420]
        %v739 = vld.sshfl [vmem:[#allocation1 + $0x8] sm:$0xff pattern:$0x75316420]
        %v740 = vld.sshfl [vmem:[#allocation1 + $0x10] sm:$0xff pattern:$0x75316420]
        %741 = vrot.lane.b32.xlu0 %v738, 110
        %v742 = vpop.permute.xlu0 %741
        %743 = vrot.lane.b32.xlu0 %v739, 110
        %v744 = vpop.permute.xlu0 %743
        %745 = vrot.lane.b32.xlu0 %v740, 110
        %v746 = vpop.permute.xlu0 %745
        %vm747 = vcmask 900096
        %v748 = vsel %vm747, %v742, %v744
        %v749 = vsel %vm747, %v744, %v746
        %v751 = vsel %vm337, %v731, 0
        %v754 = vsel %vm337, %v732, 0
        %v756 = vsel %vm311, %v748, 0
        %v758 = vsel %vm311, %v749, 0
        %760 = vmatpush.msra.mxu0 0.0
        %761 = vmatpush.msra.mxu0 0.0
        %762 = vmatpush.msra.mxu0 0.0
        %763 = vmatpush.msra.mxu0 0.0
        %764 = vmatpush.msra.mxu0 0.0
        %765 = vmatpush.msra.mxu0 0.0
        %766 = vmatpush.msra.mxu0 0.0
        %767 = vmatpush.msra.mxu0 0.0
        %768 = vmatpush.msra.mxu0 0.0
        %769 = vmatpush.msra.mxu0 0.0
        %770 = vmatpush.msra.mxu0 0.0
        %771 = vmatpush.msra.mxu0 0.0
        %772 = vmatpush.msra.mxu0 0.0
        %773 = vmatpush.msra.mxu0 0.0
        %774 = vmatpush.msra.mxu0 0.0
        %775 = vmatpush.msra.mxu0 %v756
        %776 = vmatmul.f32.gmra.mxu0 %v751
        %v777 = vpop.f32.mrf.mxu0
        %v778 = vadd.f32 0.0, %v777
        %779 = vmatmul.f32.gmra.mxu0 %v754
        %v780 = vpop.f32.mrf.mxu0
        %v781 = vadd.f32 0.0, %v780
        %782 = vdwg.mxu0
        %783 = vmatpush.msra.mxu0 0.0
        %784 = vmatpush.msra.mxu0 0.0
        %785 = vmatpush.msra.mxu0 0.0
        %786 = vmatpush.msra.mxu0 0.0
        %787 = vmatpush.msra.mxu0 0.0
        %788 = vmatpush.msra.mxu0 0.0
        %789 = vmatpush.msra.mxu0 0.0
        %790 = vmatpush.msra.mxu0 0.0
        %791 = vmatpush.msra.mxu0 0.0
        %792 = vmatpush.msra.mxu0 0.0
        %793 = vmatpush.msra.mxu0 0.0
        %794 = vmatpush.msra.mxu0 0.0
        %795 = vmatpush.msra.mxu0 0.0
        %796 = vmatpush.msra.mxu0 0.0
        %797 = vmatpush.msra.mxu0 0.0
        %798 = vmatpush.msra.mxu0 %v758
        %799 = vmatmul.f32.gmra.mxu0 %v751
        %v800 = vpop.f32.mrf.mxu0
        %v801 = vadd.f32 0.0, %v800
        %802 = vmatmul.f32.gmra.mxu0 %v754
        %v803 = vpop.f32.mrf.mxu0
        %v804 = vadd.f32 0.0, %v803
        %805 = vdwg.mxu0
        %v806 = vadd.f32 %v716, %v778
        %v807 = vadd.f32 %v717, %v801
        %v808 = vadd.f32 %v718, %v781
        %v809 = vadd.f32 %v719, %v804
        %v810 = vld [vmem:[%s303] sm:$0xff]
        %v811 = vld [vmem:[%s303 + $0x8] sm:$0xf]
        %812 = vrot.lane.b32.xlu0 %v312, 32
        %v813 = vpop.permute.xlu0 %812
        %v814 = vrot.slane %v813, 4
        %vm815 = vcmask 261120
        %v816 = vsel %vm815, %v814, %v813
        %v819 = vmul.f32 %v810, %v816
        %v820 = vmul.f32 %v811, %v814
        %v821 = vld [vmem:[%s1 + $0x60] sm:$0xff]
        %v822 = vld [vmem:[%s1 + $0x68] sm:$0xff]
        %825 = vst [vmem:[#allocation1] ss:$2 sm:$0xff] %v819
        %s826 = scalar_lea.vmem [#allocation1], 16
        %827 = vst [vmem:[%s826] ss:$2 sm:$0xff] %v820
        %v828 = vld.sshfl [vmem:[#allocation1] sm:$0xff pattern:$0x75316420]
        %v829 = vld.sshfl [vmem:[#allocation1 + $0x8] sm:$0xff pattern:$0x75316420]
        %v830 = vld.sshfl [vmem:[#allocation1 + $0x10] sm:$0xff pattern:$0x75316420]
        %831 = vrot.lane.b32.xlu0 %v828, 96
        %v832 = vpop.permute.xlu0 %831
        %833 = vrot.lane.b32.xlu0 %v829, 96
        %v834 = vpop.permute.xlu0 %833
        %835 = vrot.lane.b32.xlu0 %v830, 96
        %v836 = vpop.permute.xlu0 %835
        %vm837 = vcmask 785408
        %v838 = vsel %vm837, %v832, %v834
        %v839 = vsel %vm837, %v834, %v836
        %v841 = vsel %vm337, %v821, 0
        %v844 = vsel %vm337, %v822, 0
        %v846 = vsel %vm311, %v838, 0
        %v848 = vsel %vm311, %v839, 0
        %850 = vmatpush.msra.mxu0 0.0
        %851 = vmatpush.msra.mxu0 0.0
        %852 = vmatpush.msra.mxu0 0.0
        %853 = vmatpush.msra.mxu0 0.0
        %854 = vmatpush.msra.mxu0 0.0
        %855 = vmatpush.msra.mxu0 0.0
        %856 = vmatpush.msra.mxu0 0.0
        %857 = vmatpush.msra.mxu0 0.0
        %858 = vmatpush.msra.mxu0 0.0
        %859 = vmatpush.msra.mxu0 0.0
        %860 = vmatpush.msra.mxu0 0.0
        %861 = vmatpush.msra.mxu0 0.0
        %862 = vmatpush.msra.mxu0 0.0
        %863 = vmatpush.msra.mxu0 0.0
        %864 = vmatpush.msra.mxu0 0.0
        %865 = vmatpush.msra.mxu0 %v846
        %866 = vmatmul.f32.gmra.mxu0 %v841
        %v867 = vpop.f32.mrf.mxu0
        %v868 = vadd.f32 0.0, %v867
        %869 = vmatmul.f32.gmra.mxu0 %v844
        %v870 = vpop.f32.mrf.mxu0
        %v871 = vadd.f32 0.0, %v870
        %872 = vdwg.mxu0
        %873 = vmatpush.msra.mxu0 0.0
        %874 = vmatpush.msra.mxu0 0.0
        %875 = vmatpush.msra.mxu0 0.0
        %876 = vmatpush.msra.mxu0 0.0
        %877 = vmatpush.msra.mxu0 0.0
        %878 = vmatpush.msra.mxu0 0.0
        %879 = vmatpush.msra.mxu0 0.0
        %880 = vmatpush.msra.mxu0 0.0
        %881 = vmatpush.msra.mxu0 0.0
        %882 = vmatpush.msra.mxu0 0.0
        %883 = vmatpush.msra.mxu0 0.0
        %884 = vmatpush.msra.mxu0 0.0
        %885 = vmatpush.msra.mxu0 0.0
        %886 = vmatpush.msra.mxu0 0.0
        %887 = vmatpush.msra.mxu0 0.0
        %888 = vmatpush.msra.mxu0 %v848
        %889 = vmatmul.f32.gmra.mxu0 %v841
        %v890 = vpop.f32.mrf.mxu0
        %v891 = vadd.f32 0.0, %v890
        %892 = vmatmul.f32.gmra.mxu0 %v844
        %v893 = vpop.f32.mrf.mxu0
        %v894 = vadd.f32 0.0, %v893
        %895 = vdwg.mxu0
        %v896 = vadd.f32 %v806, %v868
        %v897 = vadd.f32 %v807, %v891
        %v898 = vadd.f32 %v808, %v871
        %v899 = vadd.f32 %v809, %v894
        %v900 = vld [vmem:[%s303] sm:$0xff]
        %v901 = vld [vmem:[%s303 + $0x8] sm:$0xf]
        %v902 = vld [vmem:[%s1 + $0x70] sm:$0xff]
        %v903 = vld [vmem:[%s1 + $0x78] sm:$0xff]
        %906 = vst [vmem:[#allocation1] ss:$2 sm:$0xff] %v900
        %s907 = scalar_lea.vmem [#allocation1], 16
        %908 = vst [vmem:[%s907] ss:$2 sm:$0xff] %v901
        %v909 = vld.sshfl [vmem:[#allocation1] sm:$0xff pattern:$0x75316420]
        %v910 = vld.sshfl [vmem:[#allocation1 + $0x8] sm:$0xff pattern:$0x75316420]
        %v911 = vld.sshfl [vmem:[#allocation1 + $0x10] sm:$0xff pattern:$0x75316420]
        %912 = vrot.lane.b32.xlu0 %v909, 95
        %v913 = vpop.permute.xlu0 %912
        %914 = vrot.lane.b32.xlu0 %v910, 95
        %v915 = vpop.permute.xlu0 %914
        %916 = vrot.lane.b32.xlu0 %v911, 95
        %v917 = vpop.permute.xlu0 %916
        %vm918 = vcmask 777216
        %v919 = vsel %vm918, %v913, %v915
        %v920 = vsel %vm918, %v915, %v917
        %v922 = vsel %vm337, %v902, 0
        %v925 = vsel %vm337, %v903, 0
        %v927 = vsel %vm311, %v919, 0
        %v929 = vsel %vm311, %v920, 0
        %931 = vmatpush.msra.mxu0 0.0
        %932 = vmatpush.msra.mxu0 0.0
        %933 = vmatpush.msra.mxu0 0.0
        %934 = vmatpush.msra.mxu0 0.0
        %935 = vmatpush.msra.mxu0 0.0
        %936 = vmatpush.msra.mxu0 0.0
        %937 = vmatpush.msra.mxu0 0.0
        %938 = vmatpush.msra.mxu0 0.0
        %939 = vmatpush.msra.mxu0 0.0
        %940 = vmatpush.msra.mxu0 0.0
        %941 = vmatpush.msra.mxu0 0.0
        %942 = vmatpush.msra.mxu0 0.0
        %943 = vmatpush.msra.mxu0 0.0
        %944 = vmatpush.msra.mxu0 0.0
        %945 = vmatpush.msra.mxu0 0.0
        %946 = vmatpush.msra.mxu0 %v927
        %947 = vmatmul.f32.gmra.mxu0 %v922
        %v948 = vpop.f32.mrf.mxu0
        %v949 = vadd.f32 0.0, %v948
        %950 = vmatmul.f32.gmra.mxu0 %v925
        %v951 = vpop.f32.mrf.mxu0
        %v952 = vadd.f32 0.0, %v951
        %953 = vdwg.mxu0
        %954 = vmatpush.msra.mxu0 0.0
        %955 = vmatpush.msra.mxu0 0.0
        %956 = vmatpush.msra.mxu0 0.0
        %957 = vmatpush.msra.mxu0 0.0
        %958 = vmatpush.msra.mxu0 0.0
        %959 = vmatpush.msra.mxu0 0.0
        %960 = vmatpush.msra.mxu0 0.0
        %961 = vmatpush.msra.mxu0 0.0
        %962 = vmatpush.msra.mxu0 0.0
        %963 = vmatpush.msra.mxu0 0.0
        %964 = vmatpush.msra.mxu0 0.0
        %965 = vmatpush.msra.mxu0 0.0
        %966 = vmatpush.msra.mxu0 0.0
        %967 = vmatpush.msra.mxu0 0.0
        %968 = vmatpush.msra.mxu0 0.0
        %969 = vmatpush.msra.mxu0 %v929
        %970 = vmatmul.f32.gmra.mxu0 %v922
        %v971 = vpop.f32.mrf.mxu0
        %v972 = vadd.f32 0.0, %v971
        %973 = vmatmul.f32.gmra.mxu0 %v925
        %v974 = vpop.f32.mrf.mxu0
        %v975 = vadd.f32 0.0, %v974
        %976 = vdwg.mxu0
        %v977 = vadd.f32 %v896, %v949
        %v978 = vadd.f32 %v897, %v972
        %v979 = vadd.f32 %v898, %v952
        %v980 = vadd.f32 %v899, %v975
        %v981 = vld [vmem:[%s303] sm:$0xff]
        %v982 = vld [vmem:[%s303 + $0x8] sm:$0xf]
        %983 = vrot.lane.b32.xlu0 %v460, 34
        %v984 = vpop.permute.xlu0 %983
        %v985 = vrot.slane %v984, 4
        %vm986 = vcmask 277504
        %v987 = vsel %vm986, %v985, %v984
        %v990 = vmul.f32 %v981, %v987
        %v991 = vmul.f32 %v982, %v985
        %v992 = vld [vmem:[%s1 + $0x80] sm:$0xff]
        %v993 = vld [vmem:[%s1 + $0x88] sm:$0xff]
        %996 = vst [vmem:[#allocation1] ss:$2 sm:$0xff] %v990
        %s997 = scalar_lea.vmem [#allocation1], 16
        %998 = vst [vmem:[%s997] ss:$2 sm:$0xff] %v991
        %v999 = vld.sshfl [vmem:[#allocation1] sm:$0xff pattern:$0x75316420]
        %v1000 = vld.sshfl [vmem:[#allocation1 + $0x8] sm:$0xff pattern:$0x75316420]
        %v1001 = vld.sshfl [vmem:[#allocation1 + $0x10] sm:$0xff pattern:$0x75316420]
        %1002 = vrot.lane.b32.xlu0 %v999, 94
        %v1003 = vpop.permute.xlu0 %1002
        %1004 = vrot.lane.b32.xlu0 %v1000, 94
        %v1005 = vpop.permute.xlu0 %1004
        %1006 = vrot.lane.b32.xlu0 %v1001, 94
        %v1007 = vpop.permute.xlu0 %1006
        %vm1008 = vcmask 769024
        %v1009 = vsel %vm1008, %v1003, %v1005
        %v1010 = vsel %vm1008, %v1005, %v1007
        %v1012 = vsel %vm337, %v992, 0
        %v1015 = vsel %vm337, %v993, 0
        %v1017 = vsel %vm311, %v1009, 0
        %v1019 = vsel %vm311, %v1010, 0
        %1021 = vmatpush.msra.mxu0 0.0
        %1022 = vmatpush.msra.mxu0 0.0
        %1023 = vmatpush.msra.mxu0 0.0
        %1024 = vmatpush.msra.mxu0 0.0
        %1025 = vmatpush.msra.mxu0 0.0
        %1026 = vmatpush.msra.mxu0 0.0
        %1027 = vmatpush.msra.mxu0 0.0
        %1028 = vmatpush.msra.mxu0 0.0
        %1029 = vmatpush.msra.mxu0 0.0
        %1030 = vmatpush.msra.mxu0 0.0
        %1031 = vmatpush.msra.mxu0 0.0
        %1032 = vmatpush.msra.mxu0 0.0
        %1033 = vmatpush.msra.mxu0 0.0
        %1034 = vmatpush.msra.mxu0 0.0
        %1035 = vmatpush.msra.mxu0 0.0
        %1036 = vmatpush.msra.mxu0 %v1017
        %1037 = vmatmul.f32.gmra.mxu0 %v1012
        %v1038 = vpop.f32.mrf.mxu0
        %v1039 = vadd.f32 0.0, %v1038
        %1040 = vmatmul.f32.gmra.mxu0 %v1015
        %v1041 = vpop.f32.mrf.mxu0
        %v1042 = vadd.f32 0.0, %v1041
        %1043 = vdwg.mxu0
        %1044 = vmatpush.msra.mxu0 0.0
        %1045 = vmatpush.msra.mxu0 0.0
        %1046 = vmatpush.msra.mxu0 0.0
        %1047 = vmatpush.msra.mxu0 0.0
        %1048 = vmatpush.msra.mxu0 0.0
        %1049 = vmatpush.msra.mxu0 0.0
        %1050 = vmatpush.msra.mxu0 0.0
        %1051 = vmatpush.msra.mxu0 0.0
        %1052 = vmatpush.msra.mxu0 0.0
        %1053 = vmatpush.msra.mxu0 0.0
        %1054 = vmatpush.msra.mxu0 0.0
        %1055 = vmatpush.msra.mxu0 0.0
        %1056 = vmatpush.msra.mxu0 0.0
        %1057 = vmatpush.msra.mxu0 0.0
        %1058 = vmatpush.msra.mxu0 0.0
        %1059 = vmatpush.msra.mxu0 %v1019
        %1060 = vmatmul.f32.gmra.mxu0 %v1012
        %v1061 = vpop.f32.mrf.mxu0
        %v1062 = vadd.f32 0.0, %v1061
        %1063 = vmatmul.f32.gmra.mxu0 %v1015
        %v1064 = vpop.f32.mrf.mxu0
        %v1065 = vadd.f32 0.0, %v1064
        %1066 = vdwg.mxu0
        %v1067 = vadd.f32 %v977, %v1039
        %v1068 = vadd.f32 %v978, %v1062
        %v1069 = vadd.f32 %v979, %v1042
        %v1070 = vadd.f32 %v980, %v1065
        %v1071 = vld [vmem:[%s7] sm:$0xff]
        %v1072 = vld [vmem:[%s7 + $0x8] sm:$0xff]
        %1074 = vset.pattern.permute.xlu0 0
        %1075 = vperm.xlu0 %1074, %v1071
        %v1076 = vpop.permute.xlu0 %1075
        %1079 = vset.pattern.permute.xlu0 0
        %1080 = vperm.xlu0 %1079, %v1072
        %v1081 = vpop.permute.xlu0 %1080
        %v1083 = vadd.f32 %v1067, %v1076
        %v1084 = vadd.f32 %v1068, %v1076
        %v1085 = vadd.f32 %v1069, %v1081
        %v1086 = vadd.f32 %v1070, %v1081
        %v1087 = vmax.f32 %v1083, 0.0
        %v1088 = vmax.f32 %v1084, 0.0
        %v1089 = vmax.f32 %v1085, 0.0
        %v1090 = vmax.f32 %v1086, 0.0
        %v1091 = vld [vmem:[%s2] sm:$0xff]
        %v1092 = vld [vmem:[%s2 + $0x8] sm:$0xff]
        %v1093 = vld [vmem:[%s2 + $0x10] sm:$0xff]
        %v1094 = vld [vmem:[%s2 + $0x18] sm:$0xff]
        %v1095 = vld [vmem:[%s7 + $0x10] sm:$0xff]
        %v1096 = vld [vmem:[%s7 + $0x18] sm:$0xff]
        %v1097 = vld [vmem:[%s7 + $0x20] sm:$0xff]
        %v1098 = vld [vmem:[%s7 + $0x28] sm:$0xff]
        %1100 = vset.pattern.permute.xlu0 0
        %1101 = vperm.xlu0 %1100, %v1095
        %v1102 = vpop.permute.xlu0 %1101
        %1105 = vset.pattern.permute.xlu0 0
        %1106 = vperm.xlu0 %1105, %v1096
        %v1107 = vpop.permute.xlu0 %1106
        %1110 = vset.pattern.permute.xlu0 0
        %1111 = vperm.xlu0 %1110, %v1097
        %v1112 = vpop.permute.xlu0 %1111
        %1115 = vset.pattern.permute.xlu0 0
        %1116 = vperm.xlu0 %1115, %v1098
        %v1117 = vpop.permute.xlu0 %1116
        %v1120 = vsel %vm554, %v1091, 0
        %v1123 = vsel %vm554, %v1092, 0
        %v1126 = vsel %vm554, %v1093, 0
        %v1129 = vsel %vm554, %v1094, 0
        %1131 = vmatpush.msra.mxu0 0.0
        %1132 = vmatpush.msra.mxu0 0.0
        %1133 = vmatpush.msra.mxu0 0.0
        %1134 = vmatpush.msra.mxu0 0.0
        %1135 = vmatpush.msra.mxu0 0.0
        %1136 = vmatpush.msra.mxu0 0.0
        %1137 = vmatpush.msra.mxu0 0.0
        %1138 = vmatpush.msra.mxu0 0.0
        %1139 = vmatpush.msra.mxu0 0.0
        %1140 = vmatpush.msra.mxu0 0.0
        %1141 = vmatpush.msra.mxu0 0.0
        %1142 = vmatpush.msra.mxu0 0.0
        %1143 = vmatpush.msra.mxu0 0.0
        %1144 = vmatpush.msra.mxu0 0.0
        %1145 = vmatpush.msra.mxu0 %v1089
        %1146 = vmatpush.msra.mxu0 %v1087
        %1147 = vmatmul.f32.gmra.mxu0 %v1120
        %v1148 = vpop.f32.mrf.mxu0
        %v1149 = vadd.f32 %v1102, %v1148
        %1150 = vmatmul.f32.gmra.mxu0 %v1123
        %v1151 = vpop.f32.mrf.mxu0
        %v1152 = vadd.f32 %v1107, %v1151
        %1153 = vmatmul.f32.gmra.mxu0 %v1126
        %v1154 = vpop.f32.mrf.mxu0
        %v1155 = vadd.f32 %v1112, %v1154
        %1156 = vmatmul.f32.gmra.mxu0 %v1129
        %v1157 = vpop.f32.mrf.mxu0
        %v1158 = vadd.f32 %v1117, %v1157
        %1159 = vdwg.mxu0
        %1160 = vmatpush.msra.mxu0 0.0
        %1161 = vmatpush.msra.mxu0 0.0
        %1162 = vmatpush.msra.mxu0 0.0
        %1163 = vmatpush.msra.mxu0 0.0
        %1164 = vmatpush.msra.mxu0 0.0
        %1165 = vmatpush.msra.mxu0 0.0
        %1166 = vmatpush.msra.mxu0 0.0
        %1167 = vmatpush.msra.mxu0 0.0
        %1168 = vmatpush.msra.mxu0 0.0
        %1169 = vmatpush.msra.mxu0 0.0
        %1170 = vmatpush.msra.mxu0 0.0
        %1171 = vmatpush.msra.mxu0 0.0
        %1172 = vmatpush.msra.mxu0 0.0
        %1173 = vmatpush.msra.mxu0 0.0
        %1174 = vmatpush.msra.mxu0 %v1090
        %1175 = vmatpush.msra.mxu0 %v1088
        %1176 = vmatmul.f32.gmra.mxu0 %v1120
        %v1177 = vpop.f32.mrf.mxu0
        %v1178 = vadd.f32 %v1102, %v1177
        %1179 = vmatmul.f32.gmra.mxu0 %v1123
        %v1180 = vpop.f32.mrf.mxu0
        %v1181 = vadd.f32 %v1107, %v1180
        %1182 = vmatmul.f32.gmra.mxu0 %v1126
        %v1183 = vpop.f32.mrf.mxu0
        %v1184 = vadd.f32 %v1112, %v1183
        %1185 = vmatmul.f32.gmra.mxu0 %v1129
        %v1186 = vpop.f32.mrf.mxu0
        %v1187 = vadd.f32 %v1117, %v1186
        %1188 = vdwg.mxu0
        %v1189 = vmax.f32 %v1149, 0.0
        %v1190 = vmax.f32 %v1178, 0.0
        %v1191 = vmax.f32 %v1152, 0.0
        %v1192 = vmax.f32 %v1181, 0.0
        %v1193 = vmax.f32 %v1155, 0.0
        %v1194 = vmax.f32 %v1184, 0.0
        %v1195 = vmax.f32 %v1158, 0.0
        %v1196 = vmax.f32 %v1187, 0.0
        %vm1197 = vcmask 138240
        %1198 = vst.msk [vmem:[#allocation2] sm:$0xff] %vm1197, 0.0
        %1199 = vst.msk [vmem:[#allocation2 + $0x18] sm:$0xff] %vm1197, 0.0
        %1200 = vst.msk [vmem:[#allocation2 + $0x30] sm:$0xff] %vm1197, 0.0
        %1201 = vst.msk [vmem:[#allocation2 + $0x48] sm:$0xff] %vm1197, 0.0
        %vm1202 = vcmask 277640
        %1203 = vst.msk [vmem:[#allocation2 + $0x10] sm:$0xff] %vm1202, 0.0
        %1204 = vst.msk [vmem:[#allocation2 + $0x28] sm:$0xff] %vm1202, 0.0
        %1205 = vst.msk [vmem:[#allocation2 + $0x40] sm:$0xff] %vm1202, 0.0
        %1206 = vst.msk [vmem:[#allocation2 + $0x58] sm:$0xff] %vm1202, 0.0
        %1215 = vrot.lane.b32.xlu0 %v1189, 17
        %v1216 = vpop.permute.xlu0 %1215
        %1217 = vrot.lane.b32.xlu0 %v1190, 17
        %v1218 = vpop.permute.xlu0 %1217
        %1219 = vrot.lane.b32.xlu0 %v1191, 17
        %v1220 = vpop.permute.xlu0 %1219
        %1221 = vrot.lane.b32.xlu0 %v1192, 17
        %v1222 = vpop.permute.xlu0 %1221
        %1223 = vrot.lane.b32.xlu0 %v1193, 17
        %v1224 = vpop.permute.xlu0 %1223
        %1225 = vrot.lane.b32.xlu0 %v1194, 17
        %v1226 = vpop.permute.xlu0 %1225
        %1227 = vrot.lane.b32.xlu0 %v1195, 17
        %v1228 = vpop.permute.xlu0 %1227
        %1229 = vrot.lane.b32.xlu0 %v1196, 17
        %v1230 = vpop.permute.xlu0 %1229
        %v1231 = vsel %vm1197, %v1216, %v1218
        %v1232 = vsel %vm1197, %v1220, %v1222
        %v1233 = vsel %vm1197, %v1224, %v1226
        %v1234 = vsel %vm1197, %v1228, %v1230
        %vm1247 = vcmask 1047688
        %1248 = vst.msk [vmem:[#allocation2] sm:$0xff] %vm1247, %v1216
        %1249 = vst [vmem:[#allocation2 + $0x8] sm:$0xff] %v1231
        %1250 = vst.msk [vmem:[#allocation2 + $0x10] sm:$0xff] %vm1197, %v1218
        %1251 = vst.msk [vmem:[#allocation2 + $0x18] sm:$0xff] %vm1247, %v1220
        %1252 = vst [vmem:[#allocation2 + $0x20] sm:$0xff] %v1232
        %1253 = vst.msk [vmem:[#allocation2 + $0x28] sm:$0xff] %vm1197, %v1222
        %1254 = vst.msk [vmem:[#allocation2 + $0x30] sm:$0xff] %vm1247, %v1224
        %1255 = vst [vmem:[#allocation2 + $0x38] sm:$0xff] %v1233
        %1256 = vst.msk [vmem:[#allocation2 + $0x40] sm:$0xff] %vm1197, %v1226
        %1257 = vst.msk [vmem:[#allocation2 + $0x48] sm:$0xff] %vm1247, %v1228
        %1258 = vst [vmem:[#allocation2 + $0x50] sm:$0xff] %v1234
        %1259 = vst.msk [vmem:[#allocation2 + $0x58] sm:$0xff] %vm1197, %v1230
        %v1260 = vld [vmem:[#allocation2] sm:$0xff]
        %v1261 = vld [vmem:[#allocation2 + $0x8] sm:$0xff]
        %v1262 = vld [vmem:[#allocation2 + $0x18] sm:$0xff]
        %v1263 = vld [vmem:[#allocation2 + $0x20] sm:$0xff]
        %v1264 = vld [vmem:[#allocation2 + $0x30] sm:$0xff]
        %v1265 = vld [vmem:[#allocation2 + $0x38] sm:$0xff]
        %v1266 = vld [vmem:[#allocation2 + $0x48] sm:$0xff]
        %v1267 = vld [vmem:[#allocation2 + $0x50] sm:$0xff]
        %v1270 = vmul.f32 %v1260, %v308
        %v1271 = vmul.f32 %v1261, %v309
        %v1272 = vmul.f32 %v1262, %v308
        %v1273 = vmul.f32 %v1263, %v309
        %v1274 = vmul.f32 %v1264, %v308
        %v1275 = vmul.f32 %v1265, %v309
        %v1276 = vmul.f32 %v1266, %v308
        %v1277 = vmul.f32 %v1267, %v309
        %v1278 = vld [vmem:[%s3] sm:$0xff]
        %v1279 = vld [vmem:[%s3 + $0x8] sm:$0xff]
        %v1280 = vld [vmem:[#allocation2 + $0x10] sm:$0xff]
        %v1281 = vld [vmem:[#allocation2 + $0x28] sm:$0xff]
        %v1282 = vld [vmem:[#allocation2 + $0x40] sm:$0xff]
        %v1283 = vld [vmem:[#allocation2 + $0x58] sm:$0xff]
        %v1284 = vld [vmem:[%s3 + $0x10] sm:$0xff]
        %v1285 = vld [vmem:[%s3 + $0x18] sm:$0xff]
        %1298 = vrot.lane.b32.xlu0 %v1260, 127
        %v1299 = vpop.permute.xlu0 %1298
        %1300 = vrot.lane.b32.xlu0 %v1261, 127
        %v1301 = vpop.permute.xlu0 %1300
        %1302 = vrot.lane.b32.xlu0 %v1280, 127
        %v1303 = vpop.permute.xlu0 %1302
        %1304 = vrot.lane.b32.xlu0 %v1262, 127
        %v1305 = vpop.permute.xlu0 %1304
        %1306 = vrot.lane.b32.xlu0 %v1263, 127
        %v1307 = vpop.permute.xlu0 %1306
        %1308 = vrot.lane.b32.xlu0 %v1281, 127
        %v1309 = vpop.permute.xlu0 %1308
        %1310 = vrot.lane.b32.xlu0 %v1264, 127
        %v1311 = vpop.permute.xlu0 %1310
        %1312 = vrot.lane.b32.xlu0 %v1265, 127
        %v1313 = vpop.permute.xlu0 %1312
        %1314 = vrot.lane.b32.xlu0 %v1282, 127
        %v1315 = vpop.permute.xlu0 %1314
        %1316 = vrot.lane.b32.xlu0 %v1266, 127
        %v1317 = vpop.permute.xlu0 %1316
        %1318 = vrot.lane.b32.xlu0 %v1267, 127
        %v1319 = vpop.permute.xlu0 %1318
        %1320 = vrot.lane.b32.xlu0 %v1283, 127
        %v1321 = vpop.permute.xlu0 %1320
        %v1322 = vsel %vm334, %v1299, %v1301
        %v1323 = vsel %vm334, %v1301, %v1303
        %v1324 = vsel %vm334, %v1305, %v1307
        %v1325 = vsel %vm334, %v1307, %v1309
        %v1326 = vsel %vm334, %v1311, %v1313
        %v1327 = vsel %vm334, %v1313, %v1315
        %v1328 = vsel %vm334, %v1317, %v1319
        %v1329 = vsel %vm334, %v1319, %v1321
        %v1339 = vsel %vm815, %v1284, 0
        %v1342 = vsel %vm815, %v1285, 0
        %1344 = vmatpush.msra.mxu0 0.0
        %1345 = vmatpush.msra.mxu0 0.0
        %1346 = vmatpush.msra.mxu0 0.0
        %1347 = vmatpush.msra.mxu0 0.0
        %1348 = vmatpush.msra.mxu0 0.0
        %1349 = vmatpush.msra.mxu0 0.0
        %1350 = vmatpush.msra.mxu0 0.0
        %1351 = vmatpush.msra.mxu0 0.0
        %1352 = vmatpush.msra.mxu0 0.0
        %1353 = vmatpush.msra.mxu0 0.0
        %1354 = vmatpush.msra.mxu0 0.0
        %1355 = vmatpush.msra.mxu0 0.0
        %1356 = vmatpush.msra.mxu0 %v1328
        %1357 = vmatpush.msra.mxu0 %v1326
        %1358 = vmatpush.msra.mxu0 %v1324
        %1359 = vmatpush.msra.mxu0 %v1322
        %1360 = vmatmul.f32.gmra.mxu0 %v1339
        %v1361 = vpop.f32.mrf.mxu0
        %v1362 = vadd.f32 0.0, %v1361
        %1363 = vmatmul.f32.gmra.mxu0 %v1342
        %v1364 = vpop.f32.mrf.mxu0
        %v1365 = vadd.f32 0.0, %v1364
        %1366 = vdwg.mxu0
        %1367 = vmatpush.msra.mxu0 0.0
        %1368 = vmatpush.msra.mxu0 0.0
        %1369 = vmatpush.msra.mxu0 0.0
        %1370 = vmatpush.msra.mxu0 0.0
        %1371 = vmatpush.msra.mxu0 0.0
        %1372 = vmatpush.msra.mxu0 0.0
        %1373 = vmatpush.msra.mxu0 0.0
        %1374 = vmatpush.msra.mxu0 0.0
        %1375 = vmatpush.msra.mxu0 0.0
        %1376 = vmatpush.msra.mxu0 0.0
        %1377 = vmatpush.msra.mxu0 0.0
        %1378 = vmatpush.msra.mxu0 0.0
        %1379 = vmatpush.msra.mxu0 %v1329
        %1380 = vmatpush.msra.mxu0 %v1327
        %1381 = vmatpush.msra.mxu0 %v1325
        %1382 = vmatpush.msra.mxu0 %v1323
        %1383 = vmatmul.f32.gmra.mxu0 %v1339
        %v1384 = vpop.f32.mrf.mxu0
        %v1385 = vadd.f32 0.0, %v1384
        %1386 = vmatmul.f32.gmra.mxu0 %v1342
        %v1387 = vpop.f32.mrf.mxu0
        %v1388 = vadd.f32 0.0, %v1387
        %1389 = vdwg.mxu0
        %v1391 = vsel %vm815, %v1278, 0
        %v1394 = vsel %vm815, %v1279, 0
        %1396 = vmatpush.msra.mxu0 0.0
        %1397 = vmatpush.msra.mxu0 0.0
        %1398 = vmatpush.msra.mxu0 0.0
        %1399 = vmatpush.msra.mxu0 0.0
        %1400 = vmatpush.msra.mxu0 0.0
        %1401 = vmatpush.msra.mxu0 0.0
        %1402 = vmatpush.msra.mxu0 0.0
        %1403 = vmatpush.msra.mxu0 0.0
        %1404 = vmatpush.msra.mxu0 0.0
        %1405 = vmatpush.msra.mxu0 0.0
        %1406 = vmatpush.msra.mxu0 0.0
        %1407 = vmatpush.msra.mxu0 0.0
        %1408 = vmatpush.msra.mxu0 %v1276
        %1409 = vmatpush.msra.mxu0 %v1274
        %1410 = vmatpush.msra.mxu0 %v1272
        %1411 = vmatpush.msra.mxu0 %v1270
        %1412 = vmatmul.f32.gmra.mxu0 %v1391
        %v1413 = vpop.f32.mrf.mxu0
        %v1414 = vadd.f32 %v1362, %v1413
        %1415 = vmatmul.f32.gmra.mxu0 %v1394
        %v1416 = vpop.f32.mrf.mxu0
        %v1417 = vadd.f32 %v1365, %v1416
        %1418 = vdwg.mxu0
        %1419 = vmatpush.msra.mxu0 0.0
        %1420 = vmatpush.msra.mxu0 0.0
        %1421 = vmatpush.msra.mxu0 0.0
        %1422 = vmatpush.msra.mxu0 0.0
        %1423 = vmatpush.msra.mxu0 0.0
        %1424 = vmatpush.msra.mxu0 0.0
        %1425 = vmatpush.msra.mxu0 0.0
        %1426 = vmatpush.msra.mxu0 0.0
        %1427 = vmatpush.msra.mxu0 0.0
        %1428 = vmatpush.msra.mxu0 0.0
        %1429 = vmatpush.msra.mxu0 0.0
        %1430 = vmatpush.msra.mxu0 0.0
        %1431 = vmatpush.msra.mxu0 %v1277
        %1432 = vmatpush.msra.mxu0 %v1275
        %1433 = vmatpush.msra.mxu0 %v1273
        %1434 = vmatpush.msra.mxu0 %v1271
        %1435 = vmatmul.f32.gmra.mxu0 %v1391
        %v1436 = vpop.f32.mrf.mxu0
        %v1437 = vadd.f32 %v1385, %v1436
        %1438 = vmatmul.f32.gmra.mxu0 %v1394
        %v1439 = vpop.f32.mrf.mxu0
        %v1440 = vadd.f32 %v1388, %v1439
        %1441 = vdwg.mxu0
        %1442 = vrot.lane.b32.xlu0 %v457, 2
        %v1443 = vpop.permute.xlu0 %1442
        %1444 = vrot.lane.b32.xlu0 %v458, 2
        %v1445 = vpop.permute.xlu0 %1444
        %v1446 = vsel %vm464, %v1443, %v1445
        %v1450 = vmul.f32 %v1260, %v1443
        %v1451 = vmul.f32 %v1261, %v1446
        %v1452 = vmul.f32 %v1280, %v1445
        %v1453 = vmul.f32 %v1262, %v1443
        %v1454 = vmul.f32 %v1263, %v1446
        %v1455 = vmul.f32 %v1281, %v1445
        %v1456 = vmul.f32 %v1264, %v1443
        %v1457 = vmul.f32 %v1265, %v1446
        %v1458 = vmul.f32 %v1282, %v1445
        %v1459 = vmul.f32 %v1266, %v1443
        %v1460 = vmul.f32 %v1267, %v1446
        %v1461 = vmul.f32 %v1283, %v1445
        %v1462 = vld [vmem:[%s3 + $0x20] sm:$0xff]
        %v1463 = vld [vmem:[%s3 + $0x28] sm:$0xff]
        %1476 = vrot.lane.b32.xlu0 %v1450, 126
        %v1477 = vpop.permute.xlu0 %1476
        %1478 = vrot.lane.b32.xlu0 %v1451, 126
        %v1479 = vpop.permute.xlu0 %1478
        %1480 = vrot.lane.b32.xlu0 %v1452, 126
        %v1481 = vpop.permute.xlu0 %1480
        %1482 = vrot.lane.b32.xlu0 %v1453, 126
        %v1483 = vpop.permute.xlu0 %1482
        %1484 = vrot.lane.b32.xlu0 %v1454, 126
        %v1485 = vpop.permute.xlu0 %1484
        %1486 = vrot.lane.b32.xlu0 %v1455, 126
        %v1487 = vpop.permute.xlu0 %1486
        %1488 = vrot.lane.b32.xlu0 %v1456, 126
        %v1489 = vpop.permute.xlu0 %1488
        %1490 = vrot.lane.b32.xlu0 %v1457, 126
        %v1491 = vpop.permute.xlu0 %1490
        %1492 = vrot.lane.b32.xlu0 %v1458, 126
        %v1493 = vpop.permute.xlu0 %1492
        %1494 = vrot.lane.b32.xlu0 %v1459, 126
        %v1495 = vpop.permute.xlu0 %1494
        %1496 = vrot.lane.b32.xlu0 %v1460, 126
        %v1497 = vpop.permute.xlu0 %1496
        %1498 = vrot.lane.b32.xlu0 %v1461, 126
        %v1499 = vpop.permute.xlu0 %1498
        %v1500 = vsel %vm486, %v1477, %v1479
        %v1501 = vsel %vm486, %v1479, %v1481
        %v1502 = vsel %vm486, %v1483, %v1485
        %v1503 = vsel %vm486, %v1485, %v1487
        %v1504 = vsel %vm486, %v1489, %v1491
        %v1505 = vsel %vm486, %v1491, %v1493
        %v1506 = vsel %vm486, %v1495, %v1497
        %v1507 = vsel %vm486, %v1497, %v1499
        %v1517 = vsel %vm815, %v1462, 0
        %v1520 = vsel %vm815, %v1463, 0
        %1522 = vmatpush.msra.mxu0 0.0
        %1523 = vmatpush.msra.mxu0 0.0
        %1524 = vmatpush.msra.mxu0 0.0
        %1525 = vmatpush.msra.mxu0 0.0
        %1526 = vmatpush.msra.mxu0 0.0
        %1527 = vmatpush.msra.mxu0 0.0
        %1528 = vmatpush.msra.mxu0 0.0
        %1529 = vmatpush.msra.mxu0 0.0
        %1530 = vmatpush.msra.mxu0 0.0
        %1531 = vmatpush.msra.mxu0 0.0
        %1532 = vmatpush.msra.mxu0 0.0
        %1533 = vmatpush.msra.mxu0 0.0
        %1534 = vmatpush.msra.mxu0 %v1506
        %1535 = vmatpush.msra.mxu0 %v1504
        %1536 = vmatpush.msra.mxu0 %v1502
        %1537 = vmatpush.msra.mxu0 %v1500
        %1538 = vmatmul.f32.gmra.mxu0 %v1517
        %v1539 = vpop.f32.mrf.mxu0
        %v1540 = vadd.f32 0.0, %v1539
        %1541 = vmatmul.f32.gmra.mxu0 %v1520
        %v1542 = vpop.f32.mrf.mxu0
        %v1543 = vadd.f32 0.0, %v1542
        %1544 = vdwg.mxu0
        %1545 = vmatpush.msra.mxu0 0.0
        %1546 = vmatpush.msra.mxu0 0.0
        %1547 = vmatpush.msra.mxu0 0.0
        %1548 = vmatpush.msra.mxu0 0.0
        %1549 = vmatpush.msra.mxu0 0.0
        %1550 = vmatpush.msra.mxu0 0.0
        %1551 = vmatpush.msra.mxu0 0.0
        %1552 = vmatpush.msra.mxu0 0.0
        %1553 = vmatpush.msra.mxu0 0.0
        %1554 = vmatpush.msra.mxu0 0.0
        %1555 = vmatpush.msra.mxu0 0.0
        %1556 = vmatpush.msra.mxu0 0.0
        %1557 = vmatpush.msra.mxu0 %v1507
        %1558 = vmatpush.msra.mxu0 %v1505
        %1559 = vmatpush.msra.mxu0 %v1503
        %1560 = vmatpush.msra.mxu0 %v1501
        %1561 = vmatmul.f32.gmra.mxu0 %v1517
        %v1562 = vpop.f32.mrf.mxu0
        %v1563 = vadd.f32 0.0, %v1562
        %1564 = vmatmul.f32.gmra.mxu0 %v1520
        %v1565 = vpop.f32.mrf.mxu0
        %v1566 = vadd.f32 0.0, %v1565
        %1567 = vdwg.mxu0
        %v1568 = vadd.f32 %v1414, %v1540
        %v1569 = vadd.f32 %v1437, %v1563
        %v1570 = vadd.f32 %v1417, %v1543
        %v1571 = vadd.f32 %v1440, %v1566
        %1572 = vrot.lane.b32.xlu0 %v308, 16
        %v1573 = vpop.permute.xlu0 %1572
        %1574 = vrot.lane.b32.xlu0 %v309, 16
        %v1575 = vpop.permute.xlu0 %1574
        %v1576 = vsel %vm554, %v1573, %v1575
        %v1580 = vmul.f32 %v1260, %v1573
        %v1581 = vmul.f32 %v1261, %v1576
        %v1582 = vmul.f32 %v1280, %v1575
        %v1583 = vmul.f32 %v1262, %v1573
        %v1584 = vmul.f32 %v1263, %v1576
        %v1585 = vmul.f32 %v1281, %v1575
        %v1586 = vmul.f32 %v1264, %v1573
        %v1587 = vmul.f32 %v1265, %v1576
        %v1588 = vmul.f32 %v1282, %v1575
        %v1589 = vmul.f32 %v1266, %v1573
        %v1590 = vmul.f32 %v1267, %v1576
        %v1591 = vmul.f32 %v1283, %v1575
        %v1592 = vld [vmem:[%s3 + $0x30] sm:$0xff]
        %v1593 = vld [vmem:[%s3 + $0x38] sm:$0xff]
        %1606 = vrot.lane.b32.xlu0 %v1580, 112
        %v1607 = vpop.permute.xlu0 %1606
        %1608 = vrot.lane.b32.xlu0 %v1581, 112
        %v1609 = vpop.permute.xlu0 %1608
        %1610 = vrot.lane.b32.xlu0 %v1582, 112
        %v1611 = vpop.permute.xlu0 %1610
        %1612 = vrot.lane.b32.xlu0 %v1583, 112
        %v1613 = vpop.permute.xlu0 %1612
        %1614 = vrot.lane.b32.xlu0 %v1584, 112
        %v1615 = vpop.permute.xlu0 %1614
        %1616 = vrot.lane.b32.xlu0 %v1585, 112
        %v1617 = vpop.permute.xlu0 %1616
        %1618 = vrot.lane.b32.xlu0 %v1586, 112
        %v1619 = vpop.permute.xlu0 %1618
        %1620 = vrot.lane.b32.xlu0 %v1587, 112
        %v1621 = vpop.permute.xlu0 %1620
        %1622 = vrot.lane.b32.xlu0 %v1588, 112
        %v1623 = vpop.permute.xlu0 %1622
        %1624 = vrot.lane.b32.xlu0 %v1589, 112
        %v1625 = vpop.permute.xlu0 %1624
        %1626 = vrot.lane.b32.xlu0 %v1590, 112
        %v1627 = vpop.permute.xlu0 %1626
        %1628 = vrot.lane.b32.xlu0 %v1591, 112
        %v1629 = vpop.permute.xlu0 %1628
        %v1630 = vsel %vm576, %v1607, %v1609
        %v1631 = vsel %vm576, %v1609, %v1611
        %v1632 = vsel %vm576, %v1613, %v1615
        %v1633 = vsel %vm576, %v1615, %v1617
        %v1634 = vsel %vm576, %v1619, %v1621
        %v1635 = vsel %vm576, %v1621, %v1623
        %v1636 = vsel %vm576, %v1625, %v1627
        %v1637 = vsel %vm576, %v1627, %v1629
        %v1647 = vsel %vm815, %v1592, 0
        %v1650 = vsel %vm815, %v1593, 0
        %1652 = vmatpush.msra.mxu0 0.0
        %1653 = vmatpush.msra.mxu0 0.0
        %1654 = vmatpush.msra.mxu0 0.0
        %1655 = vmatpush.msra.mxu0 0.0
        %1656 = vmatpush.msra.mxu0 0.0
        %1657 = vmatpush.msra.mxu0 0.0
        %1658 = vmatpush.msra.mxu0 0.0
        %1659 = vmatpush.msra.mxu0 0.0
        %1660 = vmatpush.msra.mxu0 0.0
        %1661 = vmatpush.msra.mxu0 0.0
        %1662 = vmatpush.msra.mxu0 0.0
        %1663 = vmatpush.msra.mxu0 0.0
        %1664 = vmatpush.msra.mxu0 %v1636
        %1665 = vmatpush.msra.mxu0 %v1634
        %1666 = vmatpush.msra.mxu0 %v1632
        %1667 = vmatpush.msra.mxu0 %v1630
        %1668 = vmatmul.f32.gmra.mxu0 %v1647
        %v1669 = vpop.f32.mrf.mxu0
        %v1670 = vadd.f32 0.0, %v1669
        %1671 = vmatmul.f32.gmra.mxu0 %v1650
        %v1672 = vpop.f32.mrf.mxu0
        %v1673 = vadd.f32 0.0, %v1672
        %1674 = vdwg.mxu0
        %1675 = vmatpush.msra.mxu0 0.0
        %1676 = vmatpush.msra.mxu0 0.0
        %1677 = vmatpush.msra.mxu0 0.0
        %1678 = vmatpush.msra.mxu0 0.0
        %1679 = vmatpush.msra.mxu0 0.0
        %1680 = vmatpush.msra.mxu0 0.0
        %1681 = vmatpush.msra.mxu0 0.0
        %1682 = vmatpush.msra.mxu0 0.0
        %1683 = vmatpush.msra.mxu0 0.0
        %1684 = vmatpush.msra.mxu0 0.0
        %1685 = vmatpush.msra.mxu0 0.0
        %1686 = vmatpush.msra.mxu0 0.0
        %1687 = vmatpush.msra.mxu0 %v1637
        %1688 = vmatpush.msra.mxu0 %v1635
        %1689 = vmatpush.msra.mxu0 %v1633
        %1690 = vmatpush.msra.mxu0 %v1631
        %1691 = vmatmul.f32.gmra.mxu0 %v1647
        %v1692 = vpop.f32.mrf.mxu0
        %v1693 = vadd.f32 0.0, %v1692
        %1694 = vmatmul.f32.gmra.mxu0 %v1650
        %v1695 = vpop.f32.mrf.mxu0
        %v1696 = vadd.f32 0.0, %v1695
        %1697 = vdwg.mxu0
        %v1698 = vadd.f32 %v1568, %v1670
        %v1699 = vadd.f32 %v1569, %v1693
        %v1700 = vadd.f32 %v1570, %v1673
        %v1701 = vadd.f32 %v1571, %v1696
        %v1702 = vld [vmem:[%s3 + $0x40] sm:$0xff]
        %v1703 = vld [vmem:[%s3 + $0x48] sm:$0xff]
        %1704 = vrot.lane.b32.xlu0 %v1260, 111
        %v1705 = vpop.permute.xlu0 %1704
        %1706 = vrot.lane.b32.xlu0 %v1261, 111
        %v1707 = vpop.permute.xlu0 %1706
        %1708 = vrot.lane.b32.xlu0 %v1280, 111
        %v1709 = vpop.permute.xlu0 %1708
        %1710 = vrot.lane.b32.xlu0 %v1262, 111
        %v1711 = vpop.permute.xlu0 %1710
        %1712 = vrot.lane.b32.xlu0 %v1263, 111
        %v1713 = vpop.permute.xlu0 %1712
        %1714 = vrot.lane.b32.xlu0 %v1281, 111
        %v1715 = vpop.permute.xlu0 %1714
        %1716 = vrot.lane.b32.xlu0 %v1264, 111
        %v1717 = vpop.permute.xlu0 %1716
        %1718 = vrot.lane.b32.xlu0 %v1265, 111
        %v1719 = vpop.permute.xlu0 %1718
        %1720 = vrot.lane.b32.xlu0 %v1282, 111
        %v1721 = vpop.permute.xlu0 %1720
        %1722 = vrot.lane.b32.xlu0 %v1266, 111
        %v1723 = vpop.permute.xlu0 %1722
        %1724 = vrot.lane.b32.xlu0 %v1267, 111
        %v1725 = vpop.permute.xlu0 %1724
        %1726 = vrot.lane.b32.xlu0 %v1283, 111
        %v1727 = vpop.permute.xlu0 %1726
        %v1728 = vsel %vm657, %v1705, %v1707
        %v1729 = vsel %vm657, %v1707, %v1709
        %v1730 = vsel %vm657, %v1711, %v1713
        %v1731 = vsel %vm657, %v1713, %v1715
        %v1732 = vsel %vm657, %v1717, %v1719
        %v1733 = vsel %vm657, %v1719, %v1721
        %v1734 = vsel %vm657, %v1723, %v1725
        %v1735 = vsel %vm657, %v1725, %v1727
        %v1745 = vsel %vm815, %v1702, 0
        %v1748 = vsel %vm815, %v1703, 0
        %1750 = vmatpush.msra.mxu0 0.0
        %1751 = vmatpush.msra.mxu0 0.0
        %1752 = vmatpush.msra.mxu0 0.0
        %1753 = vmatpush.msra.mxu0 0.0
        %1754 = vmatpush.msra.mxu0 0.0
        %1755 = vmatpush.msra.mxu0 0.0
        %1756 = vmatpush.msra.mxu0 0.0
        %1757 = vmatpush.msra.mxu0 0.0
        %1758 = vmatpush.msra.mxu0 0.0
        %1759 = vmatpush.msra.mxu0 0.0
        %1760 = vmatpush.msra.mxu0 0.0
        %1761 = vmatpush.msra.mxu0 0.0
        %1762 = vmatpush.msra.mxu0 %v1734
        %1763 = vmatpush.msra.mxu0 %v1732
        %1764 = vmatpush.msra.mxu0 %v1730
        %1765 = vmatpush.msra.mxu0 %v1728
        %1766 = vmatmul.f32.gmra.mxu0 %v1745
        %v1767 = vpop.f32.mrf.mxu0
        %v1768 = vadd.f32 0.0, %v1767
        %1769 = vmatmul.f32.gmra.mxu0 %v1748
        %v1770 = vpop.f32.mrf.mxu0
        %v1771 = vadd.f32 0.0, %v1770
        %1772 = vdwg.mxu0
        %1773 = vmatpush.msra.mxu0 0.0
        %1774 = vmatpush.msra.mxu0 0.0
        %1775 = vmatpush.msra.mxu0 0.0
        %1776 = vmatpush.msra.mxu0 0.0
        %1777 = vmatpush.msra.mxu0 0.0
        %1778 = vmatpush.msra.mxu0 0.0
        %1779 = vmatpush.msra.mxu0 0.0
        %1780 = vmatpush.msra.mxu0 0.0
        %1781 = vmatpush.msra.mxu0 0.0
        %1782 = vmatpush.msra.mxu0 0.0
        %1783 = vmatpush.msra.mxu0 0.0
        %1784 = vmatpush.msra.mxu0 0.0
        %1785 = vmatpush.msra.mxu0 %v1735
        %1786 = vmatpush.msra.mxu0 %v1733
        %1787 = vmatpush.msra.mxu0 %v1731
        %1788 = vmatpush.msra.mxu0 %v1729
        %1789 = vmatmul.f32.gmra.mxu0 %v1745
        %v1790 = vpop.f32.mrf.mxu0
        %v1791 = vadd.f32 0.0, %v1790
        %1792 = vmatmul.f32.gmra.mxu0 %v1748
        %v1793 = vpop.f32.mrf.mxu0
        %v1794 = vadd.f32 0.0, %v1793
        %1795 = vdwg.mxu0
        %v1796 = vadd.f32 %v1698, %v1768
        %v1797 = vadd.f32 %v1699, %v1791
        %v1798 = vadd.f32 %v1700, %v1771
        %v1799 = vadd.f32 %v1701, %v1794
        %1800 = vrot.lane.b32.xlu0 %v457, 18
        %v1801 = vpop.permute.xlu0 %1800
        %1802 = vrot.lane.b32.xlu0 %v458, 18
        %v1803 = vpop.permute.xlu0 %1802
        %v1804 = vsel %vm725, %v1801, %v1803
        %v1808 = vmul.f32 %v1260, %v1801
        %v1809 = vmul.f32 %v1261, %v1804
        %v1810 = vmul.f32 %v1280, %v1803
        %v1811 = vmul.f32 %v1262, %v1801
        %v1812 = vmul.f32 %v1263, %v1804
        %v1813 = vmul.f32 %v1281, %v1803
        %v1814 = vmul.f32 %v1264, %v1801
        %v1815 = vmul.f32 %v1265, %v1804
        %v1816 = vmul.f32 %v1282, %v1803
        %v1817 = vmul.f32 %v1266, %v1801
        %v1818 = vmul.f32 %v1267, %v1804
        %v1819 = vmul.f32 %v1283, %v1803
        %v1820 = vld [vmem:[%s3 + $0x50] sm:$0xff]
        %v1821 = vld [vmem:[%s3 + $0x58] sm:$0xff]
        %1834 = vrot.lane.b32.xlu0 %v1808, 110
        %v1835 = vpop.permute.xlu0 %1834
        %1836 = vrot.lane.b32.xlu0 %v1809, 110
        %v1837 = vpop.permute.xlu0 %1836
        %1838 = vrot.lane.b32.xlu0 %v1810, 110
        %v1839 = vpop.permute.xlu0 %1838
        %1840 = vrot.lane.b32.xlu0 %v1811, 110
        %v1841 = vpop.permute.xlu0 %1840
        %1842 = vrot.lane.b32.xlu0 %v1812, 110
        %v1843 = vpop.permute.xlu0 %1842
        %1844 = vrot.lane.b32.xlu0 %v1813, 110
        %v1845 = vpop.permute.xlu0 %1844
        %1846 = vrot.lane.b32.xlu0 %v1814, 110
        %v1847 = vpop.permute.xlu0 %1846
        %1848 = vrot.lane.b32.xlu0 %v1815, 110
        %v1849 = vpop.permute.xlu0 %1848
        %1850 = vrot.lane.b32.xlu0 %v1816, 110
        %v1851 = vpop.permute.xlu0 %1850
        %1852 = vrot.lane.b32.xlu0 %v1817, 110
        %v1853 = vpop.permute.xlu0 %1852
        %1854 = vrot.lane.b32.xlu0 %v1818, 110
        %v1855 = vpop.permute.xlu0 %1854
        %1856 = vrot.lane.b32.xlu0 %v1819, 110
        %v1857 = vpop.permute.xlu0 %1856
        %v1858 = vsel %vm747, %v1835, %v1837
        %v1859 = vsel %vm747, %v1837, %v1839
        %v1860 = vsel %vm747, %v1841, %v1843
        %v1861 = vsel %vm747, %v1843, %v1845
        %v1862 = vsel %vm747, %v1847, %v1849
        %v1863 = vsel %vm747, %v1849, %v1851
        %v1864 = vsel %vm747, %v1853, %v1855
        %v1865 = vsel %vm747, %v1855, %v1857
        %v1875 = vsel %vm815, %v1820, 0
        %v1878 = vsel %vm815, %v1821, 0
        %1880 = vmatpush.msra.mxu0 0.0
        %1881 = vmatpush.msra.mxu0 0.0
        %1882 = vmatpush.msra.mxu0 0.0
        %1883 = vmatpush.msra.mxu0 0.0
        %1884 = vmatpush.msra.mxu0 0.0
        %1885 = vmatpush.msra.mxu0 0.0
        %1886 = vmatpush.msra.mxu0 0.0
        %1887 = vmatpush.msra.mxu0 0.0
        %1888 = vmatpush.msra.mxu0 0.0
        %1889 = vmatpush.msra.mxu0 0.0
        %1890 = vmatpush.msra.mxu0 0.0
        %1891 = vmatpush.msra.mxu0 0.0
        %1892 = vmatpush.msra.mxu0 %v1864
        %1893 = vmatpush.msra.mxu0 %v1862
        %1894 = vmatpush.msra.mxu0 %v1860
        %1895 = vmatpush.msra.mxu0 %v1858
        %1896 = vmatmul.f32.gmra.mxu0 %v1875
        %v1897 = vpop.f32.mrf.mxu0
        %v1898 = vadd.f32 0.0, %v1897
        %1899 = vmatmul.f32.gmra.mxu0 %v1878
        %v1900 = vpop.f32.mrf.mxu0
        %v1901 = vadd.f32 0.0, %v1900
        %1902 = vdwg.mxu0
        %1903 = vmatpush.msra.mxu0 0.0
        %1904 = vmatpush.msra.mxu0 0.0
        %1905 = vmatpush.msra.mxu0 0.0
        %1906 = vmatpush.msra.mxu0 0.0
        %1907 = vmatpush.msra.mxu0 0.0
        %1908 = vmatpush.msra.mxu0 0.0
        %1909 = vmatpush.msra.mxu0 0.0
        %1910 = vmatpush.msra.mxu0 0.0
        %1911 = vmatpush.msra.mxu0 0.0
        %1912 = vmatpush.msra.mxu0 0.0
        %1913 = vmatpush.msra.mxu0 0.0
        %1914 = vmatpush.msra.mxu0 0.0
        %1915 = vmatpush.msra.mxu0 %v1865
        %1916 = vmatpush.msra.mxu0 %v1863
        %1917 = vmatpush.msra.mxu0 %v1861
        %1918 = vmatpush.msra.mxu0 %v1859
        %1919 = vmatmul.f32.gmra.mxu0 %v1875
        %v1920 = vpop.f32.mrf.mxu0
        %v1921 = vadd.f32 0.0, %v1920
        %1922 = vmatmul.f32.gmra.mxu0 %v1878
        %v1923 = vpop.f32.mrf.mxu0
        %v1924 = vadd.f32 0.0, %v1923
        %1925 = vdwg.mxu0
        %v1926 = vadd.f32 %v1796, %v1898
        %v1927 = vadd.f32 %v1797, %v1921
        %v1928 = vadd.f32 %v1798, %v1901
        %v1929 = vadd.f32 %v1799, %v1924
        %1930 = vrot.lane.b32.xlu0 %v308, 32
        %v1931 = vpop.permute.xlu0 %1930
        %1932 = vrot.lane.b32.xlu0 %v309, 32
        %v1933 = vpop.permute.xlu0 %1932
        %v1934 = vsel %vm815, %v1931, %v1933
        %v1938 = vmul.f32 %v1260, %v1931
        %v1939 = vmul.f32 %v1261, %v1934
        %v1940 = vmul.f32 %v1280, %v1933
        %v1941 = vmul.f32 %v1262, %v1931
        %v1942 = vmul.f32 %v1263, %v1934
        %v1943 = vmul.f32 %v1281, %v1933
        %v1944 = vmul.f32 %v1264, %v1931
        %v1945 = vmul.f32 %v1265, %v1934
        %v1946 = vmul.f32 %v1282, %v1933
        %v1947 = vmul.f32 %v1266, %v1931
        %v1948 = vmul.f32 %v1267, %v1934
        %v1949 = vmul.f32 %v1283, %v1933
        %v1950 = vld [vmem:[%s3 + $0x60] sm:$0xff]
        %v1951 = vld [vmem:[%s3 + $0x68] sm:$0xff]
        %1964 = vrot.lane.b32.xlu0 %v1938, 96
        %v1965 = vpop.permute.xlu0 %1964
        %1966 = vrot.lane.b32.xlu0 %v1939, 96
        %v1967 = vpop.permute.xlu0 %1966
        %1968 = vrot.lane.b32.xlu0 %v1940, 96
        %v1969 = vpop.permute.xlu0 %1968
        %1970 = vrot.lane.b32.xlu0 %v1941, 96
        %v1971 = vpop.permute.xlu0 %1970
        %1972 = vrot.lane.b32.xlu0 %v1942, 96
        %v1973 = vpop.permute.xlu0 %1972
        %1974 = vrot.lane.b32.xlu0 %v1943, 96
        %v1975 = vpop.permute.xlu0 %1974
        %1976 = vrot.lane.b32.xlu0 %v1944, 96
        %v1977 = vpop.permute.xlu0 %1976
        %1978 = vrot.lane.b32.xlu0 %v1945, 96
        %v1979 = vpop.permute.xlu0 %1978
        %1980 = vrot.lane.b32.xlu0 %v1946, 96
        %v1981 = vpop.permute.xlu0 %1980
        %1982 = vrot.lane.b32.xlu0 %v1947, 96
        %v1983 = vpop.permute.xlu0 %1982
        %1984 = vrot.lane.b32.xlu0 %v1948, 96
        %v1985 = vpop.permute.xlu0 %1984
        %1986 = vrot.lane.b32.xlu0 %v1949, 96
        %v1987 = vpop.permute.xlu0 %1986
        %v1988 = vsel %vm837, %v1965, %v1967
        %v1989 = vsel %vm837, %v1967, %v1969
        %v1990 = vsel %vm837, %v1971, %v1973
        %v1991 = vsel %vm837, %v1973, %v1975
        %v1992 = vsel %vm837, %v1977, %v1979
        %v1993 = vsel %vm837, %v1979, %v1981
        %v1994 = vsel %vm837, %v1983, %v1985
        %v1995 = vsel %vm837, %v1985, %v1987
        %v2005 = vsel %vm815, %v1950, 0
        %v2008 = vsel %vm815, %v1951, 0
        %2010 = vmatpush.msra.mxu0 0.0
        %2011 = vmatpush.msra.mxu0 0.0
        %2012 = vmatpush.msra.mxu0 0.0
        %2013 = vmatpush.msra.mxu0 0.0
        %2014 = vmatpush.msra.mxu0 0.0
        %2015 = vmatpush.msra.mxu0 0.0
        %2016 = vmatpush.msra.mxu0 0.0
        %2017 = vmatpush.msra.mxu0 0.0
        %2018 = vmatpush.msra.mxu0 0.0
        %2019 = vmatpush.msra.mxu0 0.0
        %2020 = vmatpush.msra.mxu0 0.0
        %2021 = vmatpush.msra.mxu0 0.0
        %2022 = vmatpush.msra.mxu0 %v1994
        %2023 = vmatpush.msra.mxu0 %v1992
        %2024 = vmatpush.msra.mxu0 %v1990
        %2025 = vmatpush.msra.mxu0 %v1988
        %2026 = vmatmul.f32.gmra.mxu0 %v2005
        %v2027 = vpop.f32.mrf.mxu0
        %v2028 = vadd.f32 0.0, %v2027
        %2029 = vmatmul.f32.gmra.mxu0 %v2008
        %v2030 = vpop.f32.mrf.mxu0
        %v2031 = vadd.f32 0.0, %v2030
        %2032 = vdwg.mxu0
        %2033 = vmatpush.msra.mxu0 0.0
        %2034 = vmatpush.msra.mxu0 0.0
        %2035 = vmatpush.msra.mxu0 0.0
        %2036 = vmatpush.msra.mxu0 0.0
        %2037 = vmatpush.msra.mxu0 0.0
        %2038 = vmatpush.msra.mxu0 0.0
        %2039 = vmatpush.msra.mxu0 0.0
        %2040 = vmatpush.msra.mxu0 0.0
        %2041 = vmatpush.msra.mxu0 0.0
        %2042 = vmatpush.msra.mxu0 0.0
        %2043 = vmatpush.msra.mxu0 0.0
        %2044 = vmatpush.msra.mxu0 0.0
        %2045 = vmatpush.msra.mxu0 %v1995
        %2046 = vmatpush.msra.mxu0 %v1993
        %2047 = vmatpush.msra.mxu0 %v1991
        %2048 = vmatpush.msra.mxu0 %v1989
        %2049 = vmatmul.f32.gmra.mxu0 %v2005
        %v2050 = vpop.f32.mrf.mxu0
        %v2051 = vadd.f32 0.0, %v2050
        %2052 = vmatmul.f32.gmra.mxu0 %v2008
        %v2053 = vpop.f32.mrf.mxu0
        %v2054 = vadd.f32 0.0, %v2053
        %2055 = vdwg.mxu0
        %v2056 = vadd.f32 %v1926, %v2028
        %v2057 = vadd.f32 %v1927, %v2051
        %v2058 = vadd.f32 %v1928, %v2031
        %v2059 = vadd.f32 %v1929, %v2054
        %v2060 = vld [vmem:[%s3 + $0x70] sm:$0xff]
        %v2061 = vld [vmem:[%s3 + $0x78] sm:$0xff]
        %2062 = vrot.lane.b32.xlu0 %v1260, 95
        %v2063 = vpop.permute.xlu0 %2062
        %2064 = vrot.lane.b32.xlu0 %v1261, 95
        %v2065 = vpop.permute.xlu0 %2064
        %2066 = vrot.lane.b32.xlu0 %v1280, 95
        %v2067 = vpop.permute.xlu0 %2066
        %2068 = vrot.lane.b32.xlu0 %v1262, 95
        %v2069 = vpop.permute.xlu0 %2068
        %2070 = vrot.lane.b32.xlu0 %v1263, 95
        %v2071 = vpop.permute.xlu0 %2070
        %2072 = vrot.lane.b32.xlu0 %v1281, 95
        %v2073 = vpop.permute.xlu0 %2072
        %2074 = vrot.lane.b32.xlu0 %v1264, 95
        %v2075 = vpop.permute.xlu0 %2074
        %2076 = vrot.lane.b32.xlu0 %v1265, 95
        %v2077 = vpop.permute.xlu0 %2076
        %2078 = vrot.lane.b32.xlu0 %v1282, 95
        %v2079 = vpop.permute.xlu0 %2078
        %2080 = vrot.lane.b32.xlu0 %v1266, 95
        %v2081 = vpop.permute.xlu0 %2080
        %2082 = vrot.lane.b32.xlu0 %v1267, 95
        %v2083 = vpop.permute.xlu0 %2082
        %2084 = vrot.lane.b32.xlu0 %v1283, 95
        %v2085 = vpop.permute.xlu0 %2084
        %v2086 = vsel %vm918, %v2063, %v2065
        %v2087 = vsel %vm918, %v2065, %v2067
        %v2088 = vsel %vm918, %v2069, %v2071
        %v2089 = vsel %vm918, %v2071, %v2073
        %v2090 = vsel %vm918, %v2075, %v2077
        %v2091 = vsel %vm918, %v2077, %v2079
        %v2092 = vsel %vm918, %v2081, %v2083
        %v2093 = vsel %vm918, %v2083, %v2085
        %v2103 = vsel %vm815, %v2060, 0
        %v2106 = vsel %vm815, %v2061, 0
        %2108 = vmatpush.msra.mxu0 0.0
        %2109 = vmatpush.msra.mxu0 0.0
        %2110 = vmatpush.msra.mxu0 0.0
        %2111 = vmatpush.msra.mxu0 0.0
        %2112 = vmatpush.msra.mxu0 0.0
        %2113 = vmatpush.msra.mxu0 0.0
        %2114 = vmatpush.msra.mxu0 0.0
        %2115 = vmatpush.msra.mxu0 0.0
        %2116 = vmatpush.msra.mxu0 0.0
        %2117 = vmatpush.msra.mxu0 0.0
        %2118 = vmatpush.msra.mxu0 0.0
        %2119 = vmatpush.msra.mxu0 0.0
        %2120 = vmatpush.msra.mxu0 %v2092
        %2121 = vmatpush.msra.mxu0 %v2090
        %2122 = vmatpush.msra.mxu0 %v2088
        %2123 = vmatpush.msra.mxu0 %v2086
        %2124 = vmatmul.f32.gmra.mxu0 %v2103
        %v2125 = vpop.f32.mrf.mxu0
        %v2126 = vadd.f32 0.0, %v2125
        %2127 = vmatmul.f32.gmra.mxu0 %v2106
        %v2128 = vpop.f32.mrf.mxu0
        %v2129 = vadd.f32 0.0, %v2128
        %2130 = vdwg.mxu0
        %2131 = vmatpush.msra.mxu0 0.0
        %2132 = vmatpush.msra.mxu0 0.0
        %2133 = vmatpush.msra.mxu0 0.0
        %2134 = vmatpush.msra.mxu0 0.0
        %2135 = vmatpush.msra.mxu0 0.0
        %2136 = vmatpush.msra.mxu0 0.0
        %2137 = vmatpush.msra.mxu0 0.0
        %2138 = vmatpush.msra.mxu0 0.0
        %2139 = vmatpush.msra.mxu0 0.0
        %2140 = vmatpush.msra.mxu0 0.0
        %2141 = vmatpush.msra.mxu0 0.0
        %2142 = vmatpush.msra.mxu0 0.0
        %2143 = vmatpush.msra.mxu0 %v2093
        %2144 = vmatpush.msra.mxu0 %v2091
        %2145 = vmatpush.msra.mxu0 %v2089
        %2146 = vmatpush.msra.mxu0 %v2087
        %2147 = vmatmul.f32.gmra.mxu0 %v2103
        %v2148 = vpop.f32.mrf.mxu0
        %v2149 = vadd.f32 0.0, %v2148
        %2150 = vmatmul.f32.gmra.mxu0 %v2106
        %v2151 = vpop.f32.mrf.mxu0
        %v2152 = vadd.f32 0.0, %v2151
        %2153 = vdwg.mxu0
        %v2154 = vadd.f32 %v2056, %v2126
        %v2155 = vadd.f32 %v2057, %v2149
        %v2156 = vadd.f32 %v2058, %v2129
        %v2157 = vadd.f32 %v2059, %v2152
        %2158 = vrot.lane.b32.xlu0 %v457, 34
        %v2159 = vpop.permute.xlu0 %2158
        %2160 = vrot.lane.b32.xlu0 %v458, 34
        %v2161 = vpop.permute.xlu0 %2160
        %v2162 = vsel %vm986, %v2159, %v2161
        %v2166 = vmul.f32 %v1260, %v2159
        %v2167 = vmul.f32 %v1261, %v2162
        %v2168 = vmul.f32 %v1280, %v2161
        %v2169 = vmul.f32 %v1262, %v2159
        %v2170 = vmul.f32 %v1263, %v2162
        %v2171 = vmul.f32 %v1281, %v2161
        %v2172 = vmul.f32 %v1264, %v2159
        %v2173 = vmul.f32 %v1265, %v2162
        %v2174 = vmul.f32 %v1282, %v2161
        %v2175 = vmul.f32 %v1266, %v2159
        %v2176 = vmul.f32 %v1267, %v2162
        %v2177 = vmul.f32 %v1283, %v2161
        %v2178 = vld [vmem:[%s3 + $0x80] sm:$0xff]
        %v2179 = vld [vmem:[%s3 + $0x88] sm:$0xff]
        %2192 = vrot.lane.b32.xlu0 %v2166, 94
        %v2193 = vpop.permute.xlu0 %2192
        %2194 = vrot.lane.b32.xlu0 %v2167, 94
        %v2195 = vpop.permute.xlu0 %2194
        %2196 = vrot.lane.b32.xlu0 %v2168, 94
        %v2197 = vpop.permute.xlu0 %2196
        %2198 = vrot.lane.b32.xlu0 %v2169, 94
        %v2199 = vpop.permute.xlu0 %2198
        %2200 = vrot.lane.b32.xlu0 %v2170, 94
        %v2201 = vpop.permute.xlu0 %2200
        %2202 = vrot.lane.b32.xlu0 %v2171, 94
        %v2203 = vpop.permute.xlu0 %2202
        %2204 = vrot.lane.b32.xlu0 %v2172, 94
        %v2205 = vpop.permute.xlu0 %2204
        %2206 = vrot.lane.b32.xlu0 %v2173, 94
        %v2207 = vpop.permute.xlu0 %2206
        %2208 = vrot.lane.b32.xlu0 %v2174, 94
        %v2209 = vpop.permute.xlu0 %2208
        %2210 = vrot.lane.b32.xlu0 %v2175, 94
        %v2211 = vpop.permute.xlu0 %2210
        %2212 = vrot.lane.b32.xlu0 %v2176, 94
        %v2213 = vpop.permute.xlu0 %2212
        %2214 = vrot.lane.b32.xlu0 %v2177, 94
        %v2215 = vpop.permute.xlu0 %2214
        %v2216 = vsel %vm1008, %v2193, %v2195
        %v2217 = vsel %vm1008, %v2195, %v2197
        %v2218 = vsel %vm1008, %v2199, %v2201
        %v2219 = vsel %vm1008, %v2201, %v2203
        %v2220 = vsel %vm1008, %v2205, %v2207
        %v2221 = vsel %vm1008, %v2207, %v2209
        %v2222 = vsel %vm1008, %v2211, %v2213
        %v2223 = vsel %vm1008, %v2213, %v2215
        %v2233 = vsel %vm815, %v2178, 0
        %v2236 = vsel %vm815, %v2179, 0
        %2238 = vmatpush.msra.mxu0 0.0
        %2239 = vmatpush.msra.mxu0 0.0
        %2240 = vmatpush.msra.mxu0 0.0
        %2241 = vmatpush.msra.mxu0 0.0
        %2242 = vmatpush.msra.mxu0 0.0
        %2243 = vmatpush.msra.mxu0 0.0
        %2244 = vmatpush.msra.mxu0 0.0
        %2245 = vmatpush.msra.mxu0 0.0
        %2246 = vmatpush.msra.mxu0 0.0
        %2247 = vmatpush.msra.mxu0 0.0
        %2248 = vmatpush.msra.mxu0 0.0
        %2249 = vmatpush.msra.mxu0 0.0
        %2250 = vmatpush.msra.mxu0 %v2222
        %2251 = vmatpush.msra.mxu0 %v2220
        %2252 = vmatpush.msra.mxu0 %v2218
        %2253 = vmatpush.msra.mxu0 %v2216
        %2254 = vmatmul.f32.gmra.mxu0 %v2233
        %v2255 = vpop.f32.mrf.mxu0
        %v2256 = vadd.f32 0.0, %v2255
        %2257 = vmatmul.f32.gmra.mxu0 %v2236
        %v2258 = vpop.f32.mrf.mxu0
        %v2259 = vadd.f32 0.0, %v2258
        %2260 = vdwg.mxu0
        %2261 = vmatpush.msra.mxu0 0.0
        %2262 = vmatpush.msra.mxu0 0.0
        %2263 = vmatpush.msra.mxu0 0.0
        %2264 = vmatpush.msra.mxu0 0.0
        %2265 = vmatpush.msra.mxu0 0.0
        %2266 = vmatpush.msra.mxu0 0.0
        %2267 = vmatpush.msra.mxu0 0.0
        %2268 = vmatpush.msra.mxu0 0.0
        %2269 = vmatpush.msra.mxu0 0.0
        %2270 = vmatpush.msra.mxu0 0.0
        %2271 = vmatpush.msra.mxu0 0.0
        %2272 = vmatpush.msra.mxu0 0.0
        %2273 = vmatpush.msra.mxu0 %v2223
        %2274 = vmatpush.msra.mxu0 %v2221
        %2275 = vmatpush.msra.mxu0 %v2219
        %2276 = vmatpush.msra.mxu0 %v2217
        %2277 = vmatmul.f32.gmra.mxu0 %v2233
        %v2278 = vpop.f32.mrf.mxu0
        %v2279 = vadd.f32 0.0, %v2278
        %2280 = vmatmul.f32.gmra.mxu0 %v2236
        %v2281 = vpop.f32.mrf.mxu0
        %v2282 = vadd.f32 0.0, %v2281
        %2283 = vdwg.mxu0
        %v2284 = vadd.f32 %v2154, %v2256
        %v2285 = vadd.f32 %v2155, %v2279
        %v2286 = vadd.f32 %v2156, %v2259
        %v2287 = vadd.f32 %v2157, %v2282
        %v2288 = vld [vmem:[%s7 + $0x30] sm:$0xff]
        %v2289 = vld [vmem:[%s7 + $0x38] sm:$0xff]
        %2291 = vset.pattern.permute.xlu0 0
        %2292 = vperm.xlu0 %2291, %v2288
        %v2293 = vpop.permute.xlu0 %2292
        %2296 = vset.pattern.permute.xlu0 0
        %2297 = vperm.xlu0 %2296, %v2289
        %v2298 = vpop.permute.xlu0 %2297
        %v2300 = vadd.f32 %v2284, %v2293
        %v2301 = vadd.f32 %v2285, %v2293
        %v2302 = vadd.f32 %v2286, %v2298
        %v2303 = vadd.f32 %v2287, %v2298
        %v2304 = vmax.f32 %v2300, 0.0
        %v2305 = vmax.f32 %v2301, 0.0
        %v2306 = vmax.f32 %v2302, 0.0
        %v2307 = vmax.f32 %v2303, 0.0
        %v2308 = vld [vmem:[%s4] sm:$0xff]
        %v2309 = vld [vmem:[%s4 + $0x8] sm:$0xff]
        %v2310 = vld [vmem:[%s4 + $0x10] sm:$0xff]
        %v2311 = vld [vmem:[%s4 + $0x18] sm:$0xff]
        %v2312 = vld [vmem:[%s7 + $0x40] sm:$0xff]
        %v2313 = vld [vmem:[%s7 + $0x48] sm:$0xff]
        %v2314 = vld [vmem:[%s7 + $0x50] sm:$0xff]
        %v2315 = vld [vmem:[%s7 + $0x58] sm:$0xff]
        %2317 = vset.pattern.permute.xlu0 0
        %2318 = vperm.xlu0 %2317, %v2312
        %v2319 = vpop.permute.xlu0 %2318
        %2322 = vset.pattern.permute.xlu0 0
        %2323 = vperm.xlu0 %2322, %v2313
        %v2324 = vpop.permute.xlu0 %2323
        %2327 = vset.pattern.permute.xlu0 0
        %2328 = vperm.xlu0 %2327, %v2314
        %v2329 = vpop.permute.xlu0 %2328
        %2332 = vset.pattern.permute.xlu0 0
        %2333 = vperm.xlu0 %2332, %v2315
        %v2334 = vpop.permute.xlu0 %2333
        %v2337 = vsel %vm554, %v2308, 0
        %v2340 = vsel %vm554, %v2309, 0
        %v2343 = vsel %vm554, %v2310, 0
        %v2346 = vsel %vm554, %v2311, 0
        %2348 = vmatpush.msra.mxu0 0.0
        %2349 = vmatpush.msra.mxu0 0.0
        %2350 = vmatpush.msra.mxu0 0.0
        %2351 = vmatpush.msra.mxu0 0.0
        %2352 = vmatpush.msra.mxu0 0.0
        %2353 = vmatpush.msra.mxu0 0.0
        %2354 = vmatpush.msra.mxu0 0.0
        %2355 = vmatpush.msra.mxu0 0.0
        %2356 = vmatpush.msra.mxu0 0.0
        %2357 = vmatpush.msra.mxu0 0.0
        %2358 = vmatpush.msra.mxu0 0.0
        %2359 = vmatpush.msra.mxu0 0.0
        %2360 = vmatpush.msra.mxu0 0.0
        %2361 = vmatpush.msra.mxu0 0.0
        %2362 = vmatpush.msra.mxu0 %v2306
        %2363 = vmatpush.msra.mxu0 %v2304
        %2364 = vmatmul.f32.gmra.mxu0 %v2337
        %v2365 = vpop.f32.mrf.mxu0
        %v2366 = vadd.f32 %v2319, %v2365
        %2367 = vmatmul.f32.gmra.mxu0 %v2340
        %v2368 = vpop.f32.mrf.mxu0
        %v2369 = vadd.f32 %v2324, %v2368
        %2370 = vmatmul.f32.gmra.mxu0 %v2343
        %v2371 = vpop.f32.mrf.mxu0
        %v2372 = vadd.f32 %v2329, %v2371
        %2373 = vmatmul.f32.gmra.mxu0 %v2346
        %v2374 = vpop.f32.mrf.mxu0
        %v2375 = vadd.f32 %v2334, %v2374
        %2376 = vdwg.mxu0
        %2377 = vmatpush.msra.mxu0 0.0
        %2378 = vmatpush.msra.mxu0 0.0
        %2379 = vmatpush.msra.mxu0 0.0
        %2380 = vmatpush.msra.mxu0 0.0
        %2381 = vmatpush.msra.mxu0 0.0
        %2382 = vmatpush.msra.mxu0 0.0
        %2383 = vmatpush.msra.mxu0 0.0
        %2384 = vmatpush.msra.mxu0 0.0
        %2385 = vmatpush.msra.mxu0 0.0
        %2386 = vmatpush.msra.mxu0 0.0
        %2387 = vmatpush.msra.mxu0 0.0
        %2388 = vmatpush.msra.mxu0 0.0
        %2389 = vmatpush.msra.mxu0 0.0
        %2390 = vmatpush.msra.mxu0 0.0
        %2391 = vmatpush.msra.mxu0 %v2307
        %2392 = vmatpush.msra.mxu0 %v2305
        %2393 = vmatmul.f32.gmra.mxu0 %v2337
        %v2394 = vpop.f32.mrf.mxu0
        %v2395 = vadd.f32 %v2319, %v2394
        %2396 = vmatmul.f32.gmra.mxu0 %v2340
        %v2397 = vpop.f32.mrf.mxu0
        %v2398 = vadd.f32 %v2324, %v2397
        %2399 = vmatmul.f32.gmra.mxu0 %v2343
        %v2400 = vpop.f32.mrf.mxu0
        %v2401 = vadd.f32 %v2329, %v2400
        %2402 = vmatmul.f32.gmra.mxu0 %v2346
        %v2403 = vpop.f32.mrf.mxu0
        %v2404 = vadd.f32 %v2334, %v2403
        %2405 = vdwg.mxu0
        %2406 = vst [vmem:[%s298] sm:$0xff] %v2366
        %2407 = vst [vmem:[%s298 + $0x8] sm:$0xff] %v2395
        %2408 = vst [vmem:[%s298 + $0x10] sm:$0xff] %v2369
        %2409 = vst [vmem:[%s298 + $0x18] sm:$0xff] %v2398
        %2410 = vst [vmem:[%s298 + $0x20] sm:$0xff] %v2372
        %2411 = vst [vmem:[%s298 + $0x28] sm:$0xff] %v2401
        %2412 = vst [vmem:[%s298 + $0x30] sm:$0xff] %v2375
        %2413 = vst [vmem:[%s298 + $0x38] sm:$0xff] %v2404
        %s2414 = sand.u32 %s203, 1
        %s2415 = scalar_lea.sflag [#allocation4], %s2414
        %s2416 = sand.u32 %s203, 1
        %s2417 = smul.addr %s2416, 64
        %s2418 = scalar_lea.vmem [#allocation3], %s2417
        // Predicated region
        $region53: #{tpu_custom_call.1} parent=51 // pred_check
          %p2419 = pneg %p213
        $region54: #{tpu_custom_call.1} parent=51 // pred_check_branch
          %2421 = sbr.rel (%p2419) target = $region56
        $region55: #{tpu_custom_call.1} parent=51 // pred_region
          %2423 = vsyncadd %s2415, 0
          %s2424 = smul.addr %s22, 8
          %s2425 = smul.addr %s2424, 8
          %s2426 = scalar_lea.hbm %s8, %s2425
          %s2427 = sshll.u32 %s2418, 4
          %s2428 = int_to_ptr.vmem [resolvable:$true] %s2427
          %s2429 = sshll.u32 %s2426, 4
          %s2430 = int_to_ptr.hbm [resolvable:$true] %s2429
          %2435 = dma.vmem_to_hbm [thread:$0]  %s2428, 1024, %s2430, %s2415, 256, 256, 16
        $region56: #{tpu_custom_call.1} parent=51 // pred_fallthru
          _
      $region52: #{tpu_custom_call.1} parent=5 // pred_fallthru
        _
      %p2436 = scmp.le.s32.totalorder 2, %s17
      // Predicated region
      $region57: #{tpu_custom_call.1} parent=5 // pred_check
        %p2437 = pneg %p2436
      $region58: #{tpu_custom_call.1} parent=5 // pred_check_branch
        %2439 = sbr.rel (%p2437) target = $region60
      $region59: #{tpu_custom_call.1} parent=5 // pred_region
        %s2440 = ssub.s32 %s17, 2
        // Predicated region
        $region61: #{tpu_custom_call.1} parent=59 // pred_check
          %p2441 = pneg %p219
        $region62: #{tpu_custom_call.1} parent=59 // pred_check_branch
          %2443 = sbr.rel (%p2441) target = $region64
        $region63: #{tpu_custom_call.1} parent=59 // pred_region
          %s2444 = sand.u32 %s204, 1
          %s2445 = scalar_lea.sflag [#allocation4], %s2444
          %s2446 = sand.u32 %s204, 1
          %s2447 = smul.addr %s2446, 64
          %s2448 = scalar_lea.vmem [#allocation3], %s2447
          %2450 = dma.done %s2445, 1024
        $region64: #{tpu_custom_call.1} parent=59 // pred_fallthru
          _
      $region60: #{tpu_custom_call.1} parent=5 // pred_fallthru
        _
    $region6: #{tpu_custom_call.1} parent=1 // loop_footer
      %s21 = sadd.s32 1, %s17
    $region7: #{tpu_custom_call.1} parent=1 // loop_footer_branch
      %16 = sbr.rel target = $region3
    $region8: #{tpu_custom_call.1} parent=1 // loop_exit
      _
    %2451 = vsyncpa [#allocation4], 1
    %s2452 = scalar_lea.sflag [#allocation4], 1
    %2453 = vsyncpa %s2452, 1

</llo_original>
